<compile_context>
chip_gen: v6e
topology: v6e:2x2x1
jax: 0.10.0
libtpu: 0.0.40
codegen_flags: <defaults>
</compile_context>

<pallas_src>
import functools

import jax
import jax.numpy as jnp
from jax.experimental import pallas as pl
from jax.experimental.pallas import tpu as pltpu


# --------------------------- in-kernel layer body ----------------------------
def _gat_layer(x, w_aug, bias, adj, *, heads, fpp, apply_relu):
    """One GATConv layer on VMEM-resident values.

    x     : (N, Cin)
    w_aug : (Cin, heads*fpp + 2*heads)   [ W | W_h @ a_dst_h | W_h @ a_src_h ]
    bias  : (1, heads*fpp)
    adj   : (N, N)  adj[dst, src] > 0 where edge src->dst (self-loops included)
    """
    n = x.shape[0]
    c = heads * fpp

    # Single projection matmul; e_dst / e_src fall out as extra lane columns.
    z = jnp.dot(x, w_aug, preferred_element_type=jnp.float32)   # (N, c + 2*heads)
    h = z[:, :c]                                                # (N, c)
    e_dst_t = z[:, c:c + heads].T                               # (heads, N)
    e_src_t = z[:, c + heads:].T                                # (heads, N)

    # Batched (heads, N, N) scores via one broadcasted VPU add.
    scores = e_dst_t[:, :, None] + e_src_t[:, None, :]          # (heads, N, N)
    scores = jnp.where(scores >= 0.0, scores, 0.2 * scores)     # LeakyReLU 0.2
    # Exact off-edge masking (broadcast single (N, N) adj over heads).
    scores = jnp.where(adj[None, :, :] > 0.0, scores, -1e9)

    # One softmax pass over the whole (heads, N, N) block; exact divide.
    m = jnp.max(scores, axis=-1, keepdims=True)
    p = jnp.exp(scores - m)
    denom = jnp.sum(p, axis=-1, keepdims=True)
    alpha = p / denom                                           # (heads, N, N)

    # Batched aggregation; one lane-dense slab out.
    h3 = h.reshape(n, heads, fpp).transpose(1, 0, 2)            # (heads, N, fpp)
    out3 = jnp.einsum('hij,hjf->hif', alpha, h3,
                      preferred_element_type=jnp.float32)       # (heads, N, fpp)
    out = out3.transpose(1, 0, 2).reshape(n, c) + bias          # (N, c)
    if apply_relu:
        out = jnp.maximum(out, 0.0)
    return out


def _gat2_kernel(x_ref, adj_ref, w1_ref, b1_ref, w2_ref, b2_ref, out_ref,
                 *, heads, num_hid, out_channels):
    adj = adj_ref[...]
    h = _gat_layer(x_ref[...], w1_ref[...], b1_ref[...], adj,
                   heads=heads, fpp=num_hid, apply_relu=True)
    # F.dropout between layers: eval-mode identity.
    out = _gat_layer(h, w2_ref[...], b2_ref[...], adj,
                     heads=heads, fpp=out_channels, apply_relu=False)
    out_ref[...] = out.astype(out_ref.dtype)        # single lane-dense store


# ------------------------------ wrapper (XLA side) ---------------------------
def _fold_vec(w, a, heads, fpp):
    # w: (Cin, heads*fpp), a: (heads, fpp) -> (Cin, heads), col h = W_h @ a_h
    w3 = w.reshape(w.shape[0], heads, fpp)
    return jnp.einsum("chf,hf->ch", w3, a)


def fold_gat2_params(params, *, heads, num_hid, out_channels):
    """One-time weight folding (hoisted out of the per-forward path)."""
    f32 = jnp.float32
    w1_aug = jnp.concatenate(
        [params["w1"],
         _fold_vec(params["w1"], params["adst1"], heads, num_hid),
         _fold_vec(params["w1"], params["asrc1"], heads, num_hid)],
        axis=1).astype(f32)
    w2_aug = jnp.concatenate(
        [params["w2"],
         _fold_vec(params["w2"], params["adst2"], heads, out_channels),
         _fold_vec(params["w2"], params["asrc2"], heads, out_channels)],
        axis=1).astype(f32)
    return {
        "w1_aug": w1_aug, "b1": params["b1"].astype(f32),
        "w2_aug": w2_aug, "b2": params["b2"].astype(f32),
    }


def gat2_forward(x, adj, folded, *, heads, num_hid, out_channels):
    """Fused two-layer GAT forward; whole graph VMEM-resident (small N only)."""
    n = x.shape[0]
    f32 = jnp.float32
    kernel = functools.partial(_gat2_kernel, heads=heads, num_hid=num_hid,
                               out_channels=out_channels)
    return pl.pallas_call(
        kernel,
        out_shape=jax.ShapeDtypeStruct((n, heads * out_channels), f32),
        in_specs=[pl.BlockSpec(memory_space=pltpu.MemorySpace.VMEM)] * 6,
        out_specs=pl.BlockSpec(memory_space=pltpu.MemorySpace.VMEM),
    )(x.astype(f32), adj.astype(f32), folded["w1_aug"], folded["b1"],
      folded["w2_aug"], folded["b2"])


# ----------------------------- pure-JAX reference ---------------------------
def _gat_conv_ref(x, w, asrc, adst, bias, adj, heads, fpp, apply_relu):
    h = x @ w
    outs = []
    for hd in range(heads):
        hh = h[:, hd * fpp:(hd + 1) * fpp]
        e_s = hh @ asrc[hd]
        e_d = hh @ adst[hd]
        sc = e_d[:, None] + e_s[None, :]
        sc = jnp.where(sc >= 0.0, sc, 0.2 * sc)
        sc = jnp.where(adj > 0.0, sc, -1e9)
        a = jax.nn.softmax(sc, axis=-1)
        outs.append(a @ hh)
    out = jnp.concatenate(outs, axis=-1) + bias
    return jnp.maximum(out, 0.0) if apply_relu else out


def gat2_ref(x, adj, params, *, heads, num_hid, out_channels):
    h = _gat_conv_ref(x, params["w1"], params["asrc1"], params["adst1"],
                      params["b1"], adj, heads, num_hid, True)
    return _gat_conv_ref(h, params["w2"], params["asrc2"], params["adst2"],
                         params["b2"], adj, heads, out_channels, False)


# ------------------------------------ main -----------------------------------
if __name__ == "__main__":
    N = 16              # nodes
    in_channels = 4
    num_hid = 16
    heads = 2
    out_channels = 4

    key = jax.random.PRNGKey(0)
    ks = jax.random.split(key, 9)

    x = jax.random.normal(ks[0], (N, in_channels), jnp.float32)

    # deterministic edge_index: bidirectional ring graph, shape (2, E)
    src = jnp.concatenate([jnp.arange(N), (jnp.arange(N) + 1) % N])
    dst = jnp.concatenate([(jnp.arange(N) + 1) % N, jnp.arange(N)])
    edge_index = jnp.stack([src, dst])          # row 0 = source, row 1 = target

    # dense adjacency mask adj[dst, src] with self-loops (PyG add_self_loops)
    adj = jnp.zeros((N, N), jnp.float32)
    adj = adj.at[edge_index[1], edge_index[0]].set(1.0)
    adj = adj.at[jnp.arange(N), jnp.arange(N)].set(1.0)

    params = {
        "w1":    0.3 * jax.random.normal(ks[1], (in_channels, heads * num_hid), jnp.float32),
        "asrc1": 0.3 * jax.random.normal(ks[2], (heads, num_hid), jnp.float32),
        "adst1": 0.3 * jax.random.normal(ks[3], (heads, num_hid), jnp.float32),
        "b1":    0.1 * jax.random.normal(ks[4], (1, heads * num_hid), jnp.float32),
        "w2":    0.3 * jax.random.normal(ks[5], (heads * num_hid, heads * out_channels), jnp.float32),
        "asrc2": 0.3 * jax.random.normal(ks[6], (heads, out_channels), jnp.float32),
        "adst2": 0.3 * jax.random.normal(ks[7], (heads, out_channels), jnp.float32),
        "b2":    0.1 * jax.random.normal(ks[8], (1, heads * out_channels), jnp.float32),
    }

    # Fold once (not per forward).
    folded = fold_gat2_params(params, heads=heads, num_hid=num_hid,
                              out_channels=out_channels)

    out = gat2_forward(x, adj, folded, heads=heads, num_hid=num_hid,
                       out_channels=out_channels)
    out = jax.block_until_ready(out)

    ref = gat2_ref(x, adj, params, heads=heads, num_hid=num_hid,
                   out_channels=out_channels)
    assert out.shape == (N, heads * out_channels), out.shape
    assert jnp.allclose(out, ref, atol=2e-3, rtol=2e-3), \
        f"max abs err {jnp.max(jnp.abs(out - ref))}"

    print("KERNEL_OK")
</pallas_src>

<mosaic_0001>
module attributes {stable_mosaic.version = 11 : i64} {
  func.func @_gat2_kernel(%arg0: memref<16x4xf32, #tpu.memory_space<vmem>>, %arg1: memref<16x16xf32, #tpu.memory_space<vmem>>, %arg2: memref<4x36xf32, #tpu.memory_space<vmem>>, %arg3: memref<1x32xf32, #tpu.memory_space<vmem>>, %arg4: memref<32x12xf32, #tpu.memory_space<vmem>>, %arg5: memref<1x8xf32, #tpu.memory_space<vmem>>, %arg6: memref<16x8xf32, #tpu.memory_space<vmem>>) attributes {dimension_semantics = [], scalar_prefetch = 0 : i64, scratch_operands = 0 : i64, tpu.core_type = #tpu.core_type<tc>} {
    %c0 = arith.constant 0 : index
    %c0_0 = arith.constant 0 : index
    %0 = vector.load %arg1[%c0, %c0_0] : memref<16x16xf32, #tpu.memory_space<vmem>>, vector<16x16xf32>
    %c0_1 = arith.constant 0 : index
    %c0_2 = arith.constant 0 : index
    %1 = vector.load %arg0[%c0_1, %c0_2] : memref<16x4xf32, #tpu.memory_space<vmem>>, vector<16x4xf32>
    %c0_3 = arith.constant 0 : index
    %c0_4 = arith.constant 0 : index
    %2 = vector.load %arg2[%c0_3, %c0_4] : memref<4x36xf32, #tpu.memory_space<vmem>>, vector<4x36xf32>
    %c0_5 = arith.constant 0 : index
    %c0_6 = arith.constant 0 : index
    %3 = vector.load %arg3[%c0_5, %c0_6] : memref<1x32xf32, #tpu.memory_space<vmem>>, vector<1x32xf32>
    %cst = arith.constant dense<0.000000e+00> : vector<16x36xf32>
    %4 = tpu.matmul %1, %2, %cst {dimension_numbers = #tpu.dot_dimension_numbers<[1], [0], [0], [1], [0, 0, 1, 1], [], []>} : vector<16x4xf32>, vector<4x36xf32>, vector<16x36xf32> -> vector<16x36xf32>
    %5 = vector.extract_strided_slice %4 {offsets = [0, 0], sizes = [16, 32], strides = [1, 1]} : vector<16x36xf32> to vector<16x32xf32>
    %6 = vector.extract_strided_slice %4 {offsets = [0, 32], sizes = [16, 2], strides = [1, 1]} : vector<16x36xf32> to vector<16x2xf32>
    %7 = tpu.transpose %6, [1, 0] : vector<16x2xf32> -> vector<2x16xf32>
    %8 = vector.extract_strided_slice %4 {offsets = [0, 34], sizes = [16, 2], strides = [1, 1]} : vector<16x36xf32> to vector<16x2xf32>
    %9 = tpu.transpose %8, [1, 0] : vector<16x2xf32> -> vector<2x16xf32>
    %10 = vector.shape_cast %7 : vector<2x16xf32> to vector<2x16x1xf32>
    %11 = vector.shape_cast %9 : vector<2x16xf32> to vector<2x1x16xf32>
    %12 = vector.broadcast %10 : vector<2x16x1xf32> to vector<2x16x16xf32>
    %13 = vector.broadcast %11 : vector<2x1x16xf32> to vector<2x16x16xf32>
    %14 = arith.addf %12, %13 : vector<2x16x16xf32>
    %cst_7 = arith.constant 0.000000e+00 : f32
    %15 = vector.broadcast %cst_7 : f32 to vector<2x16x16xf32>
    %16 = arith.cmpf oge, %14, %15 : vector<2x16x16xf32>
    %cst_8 = arith.constant 2.000000e-01 : f32
    %17 = vector.broadcast %cst_8 : f32 to vector<2x16x16xf32>
    %18 = arith.mulf %17, %14 : vector<2x16x16xf32>
    %19 = arith.select %16, %14, %18 : vector<2x16x16xi1>, vector<2x16x16xf32>
    %20 = vector.shape_cast %0 : vector<16x16xf32> to vector<1x16x16xf32>
    %cst_9 = arith.constant 0.000000e+00 : f32
    %21 = vector.broadcast %cst_9 : f32 to vector<1x16x16xf32>
    %22 = arith.cmpf ogt, %20, %21 : vector<1x16x16xf32>
    %cst_10 = arith.constant -1.000000e+09 : f32
    %23 = vector.shape_cast %22 : vector<1x16x16xi1> to vector<1x16x16xi1>
    %24 = vector.broadcast %23 : vector<1x16x16xi1> to vector<2x16x16xi1>
    %25 = vector.broadcast %cst_10 : f32 to vector<2x16x16xf32>
    %26 = arith.select %24, %19, %25 : vector<2x16x16xi1>, vector<2x16x16xf32>
    %cst_11 = arith.constant dense<0xFF800000> : vector<2x16xf32>
    %27 = vector.multi_reduction <maximumf>, %26, %cst_11 [2] : vector<2x16x16xf32> to vector<2x16xf32>
    %28 = vector.shape_cast %27 : vector<2x16xf32> to vector<2x16x1xf32>
    %29 = vector.broadcast %28 : vector<2x16x1xf32> to vector<2x16x16xf32>
    %30 = arith.subf %26, %29 : vector<2x16x16xf32>
    %31 = math.exp %30 : vector<2x16x16xf32>
    %cst_12 = arith.constant dense<0.000000e+00> : vector<2x16xf32>
    %32 = vector.multi_reduction <add>, %31, %cst_12 [2] : vector<2x16x16xf32> to vector<2x16xf32>
    %33 = vector.shape_cast %32 : vector<2x16xf32> to vector<2x16x1xf32>
    %34 = vector.broadcast %33 : vector<2x16x1xf32> to vector<2x16x16xf32>
    %35 = arith.divf %31, %34 : vector<2x16x16xf32>
    %36 = vector.shape_cast %5 : vector<16x32xf32> to vector<16x2x16xf32>
    %37 = tpu.transpose %36, [1, 0, 2] : vector<16x2x16xf32> -> vector<2x16x16xf32>
    "tpu.trace_start"() <{level = 10 : i32, message = "hij,hjf->hif"}> : () -> ()
    %cst_13 = arith.constant dense<0.000000e+00> : vector<2x16x16xf32>
    %38 = tpu.matmul %35, %37, %cst_13 {dimension_numbers = #tpu.dot_dimension_numbers<[2], [1], [1], [2], [0, 0, 0, 1, 1, 2], [0], [0]>} : vector<2x16x16xf32>, vector<2x16x16xf32>, vector<2x16x16xf32> -> vector<2x16x16xf32>
    "tpu.trace_stop"() : () -> ()
    %39 = tpu.transpose %38, [1, 0, 2] : vector<2x16x16xf32> -> vector<16x2x16xf32>
    %40 = vector.shape_cast %39 : vector<16x2x16xf32> to vector<16x32xf32>
    %41 = vector.broadcast %3 : vector<1x32xf32> to vector<16x32xf32>
    %42 = arith.addf %40, %41 : vector<16x32xf32>
    %cst_14 = arith.constant 0.000000e+00 : f32
    %43 = vector.broadcast %cst_14 : f32 to vector<16x32xf32>
    %44 = arith.maximumf %42, %43 : vector<16x32xf32>
    %c0_15 = arith.constant 0 : index
    %c0_16 = arith.constant 0 : index
    %45 = vector.load %arg4[%c0_15, %c0_16] : memref<32x12xf32, #tpu.memory_space<vmem>>, vector<32x12xf32>
    %c0_17 = arith.constant 0 : index
    %c0_18 = arith.constant 0 : index
    %46 = vector.load %arg5[%c0_17, %c0_18] : memref<1x8xf32, #tpu.memory_space<vmem>>, vector<1x8xf32>
    %cst_19 = arith.constant dense<0.000000e+00> : vector<16x12xf32>
    %47 = tpu.matmul %44, %45, %cst_19 {dimension_numbers = #tpu.dot_dimension_numbers<[1], [0], [0], [1], [0, 0, 1, 1], [], []>} : vector<16x32xf32>, vector<32x12xf32>, vector<16x12xf32> -> vector<16x12xf32>
    %48 = vector.extract_strided_slice %47 {offsets = [0, 0], sizes = [16, 8], strides = [1, 1]} : vector<16x12xf32> to vector<16x8xf32>
    %49 = vector.extract_strided_slice %47 {offsets = [0, 8], sizes = [16, 2], strides = [1, 1]} : vector<16x12xf32> to vector<16x2xf32>
    %50 = tpu.transpose %49, [1, 0] : vector<16x2xf32> -> vector<2x16xf32>
    %51 = vector.extract_strided_slice %47 {offsets = [0, 10], sizes = [16, 2], strides = [1, 1]} : vector<16x12xf32> to vector<16x2xf32>
    %52 = tpu.transpose %51, [1, 0] : vector<16x2xf32> -> vector<2x16xf32>
    %53 = vector.shape_cast %50 : vector<2x16xf32> to vector<2x16x1xf32>
    %54 = vector.shape_cast %52 : vector<2x16xf32> to vector<2x1x16xf32>
    %55 = vector.broadcast %53 : vector<2x16x1xf32> to vector<2x16x16xf32>
    %56 = vector.broadcast %54 : vector<2x1x16xf32> to vector<2x16x16xf32>
    %57 = arith.addf %55, %56 : vector<2x16x16xf32>
    %cst_20 = arith.constant 0.000000e+00 : f32
    %58 = vector.broadcast %cst_20 : f32 to vector<2x16x16xf32>
    %59 = arith.cmpf oge, %57, %58 : vector<2x16x16xf32>
    %cst_21 = arith.constant 2.000000e-01 : f32
    %60 = vector.broadcast %cst_21 : f32 to vector<2x16x16xf32>
    %61 = arith.mulf %60, %57 : vector<2x16x16xf32>
    %62 = arith.select %59, %57, %61 : vector<2x16x16xi1>, vector<2x16x16xf32>
    %63 = vector.shape_cast %0 : vector<16x16xf32> to vector<1x16x16xf32>
    %cst_22 = arith.constant 0.000000e+00 : f32
    %64 = vector.broadcast %cst_22 : f32 to vector<1x16x16xf32>
    %65 = arith.cmpf ogt, %63, %64 : vector<1x16x16xf32>
    %cst_23 = arith.constant -1.000000e+09 : f32
    %66 = vector.shape_cast %65 : vector<1x16x16xi1> to vector<1x16x16xi1>
    %67 = vector.broadcast %66 : vector<1x16x16xi1> to vector<2x16x16xi1>
    %68 = vector.broadcast %cst_23 : f32 to vector<2x16x16xf32>
    %69 = arith.select %67, %62, %68 : vector<2x16x16xi1>, vector<2x16x16xf32>
    %cst_24 = arith.constant dense<0xFF800000> : vector<2x16xf32>
    %70 = vector.multi_reduction <maximumf>, %69, %cst_24 [2] : vector<2x16x16xf32> to vector<2x16xf32>
    %71 = vector.shape_cast %70 : vector<2x16xf32> to vector<2x16x1xf32>
    %72 = vector.broadcast %71 : vector<2x16x1xf32> to vector<2x16x16xf32>
    %73 = arith.subf %69, %72 : vector<2x16x16xf32>
    %74 = math.exp %73 : vector<2x16x16xf32>
    %cst_25 = arith.constant dense<0.000000e+00> : vector<2x16xf32>
    %75 = vector.multi_reduction <add>, %74, %cst_25 [2] : vector<2x16x16xf32> to vector<2x16xf32>
    %76 = vector.shape_cast %75 : vector<2x16xf32> to vector<2x16x1xf32>
    %77 = vector.broadcast %76 : vector<2x16x1xf32> to vector<2x16x16xf32>
    %78 = arith.divf %74, %77 : vector<2x16x16xf32>
    %79 = vector.shape_cast %48 : vector<16x8xf32> to vector<16x2x4xf32>
    %80 = tpu.transpose %79, [1, 0, 2] : vector<16x2x4xf32> -> vector<2x16x4xf32>
    "tpu.trace_start"() <{level = 10 : i32, message = "hij,hjf->hif"}> : () -> ()
    %cst_26 = arith.constant dense<0.000000e+00> : vector<2x16x4xf32>
    %81 = tpu.matmul %78, %80, %cst_26 {dimension_numbers = #tpu.dot_dimension_numbers<[2], [1], [1], [2], [0, 0, 0, 1, 1, 2], [0], [0]>} : vector<2x16x16xf32>, vector<2x16x4xf32>, vector<2x16x4xf32> -> vector<2x16x4xf32>
    "tpu.trace_stop"() : () -> ()
    %82 = tpu.transpose %81, [1, 0, 2] : vector<2x16x4xf32> -> vector<16x2x4xf32>
    %83 = vector.shape_cast %82 : vector<16x2x4xf32> to vector<16x8xf32>
    %84 = vector.broadcast %46 : vector<1x8xf32> to vector<16x8xf32>
    %85 = arith.addf %83, %84 : vector<16x8xf32>
    %c0_27 = arith.constant 0 : index
    %c0_28 = arith.constant 0 : index
    %86 = vector.load %arg6[%c0_27, %c0_28] : memref<16x8xf32, #tpu.memory_space<vmem>>, vector<16x8xf32>
    tpu.vector_store %arg6[%c0_27, %c0_28], %85 {strides = array<i32>} : memref<16x8xf32, #tpu.memory_space<vmem>>, vector<16x8xf32>,
    return
  }
}

</mosaic_0001>

<llo_original>
// kernel: tpu_custom_call.1
$region0: #{tpu_custom_call.1}
  #allocation0 [shape = 'u32[]', space=smem, size = 0x4, offset = 0x4, fixed_abs, tag = 'smem constant byte address 0x4 - core index']
  #allocation1 [shape = 'u32[144,128]{1,0:T(1,128)}', space=vmem, size = 0x12000, scoped, tag = 'internal scratch']
  %s0 = inlined_call_operand.vmem [shape: f32[16,4], index: 0, kind: input, shape index: {}]
  %s1 = inlined_call_operand.vmem [shape: f32[16,16], index: 1, kind: input, shape index: {}]
  %s2 = inlined_call_operand.vmem [shape: f32[4,36], index: 2, kind: input, shape index: {}]
  %s3 = inlined_call_operand.vmem [shape: f32[1,32], index: 3, kind: input, shape index: {}]
  %s4 = inlined_call_operand.vmem [shape: f32[32,12], index: 4, kind: input, shape index: {}]
  %s5 = inlined_call_operand.vmem [shape: f32[1,8], index: 5, kind: input, shape index: {}]
  %s6 = inlined_call_operand.vmem [shape: f32[16,8], index: 6, kind: output, shape index: {}]
  %s7 = sld [smem:[#allocation0]]
  $region34: #{tpu_custom_call.1} parent=0
    _
  %s9 = ssub.s32 1, %s7
  %s10 = scalar_select 0, %s9, %s7
  // Predicated region
  $region2: #{tpu_custom_call.1} parent=0 // pred_check
    _
  $region3: #{tpu_custom_call.1} parent=0 // pred_check_branch
    %12 = sbr.rel (0) target = $region5
  $region4: #{tpu_custom_call.1} parent=0 // pred_region
    _
  $region5: #{tpu_custom_call.1} parent=0 // pred_fallthru
    _
  // Predicated region
  $region6: #{tpu_custom_call.1} parent=0 // pred_check
    _
  $region7: #{tpu_custom_call.1} parent=0 // pred_check_branch
    %14 = sbr.rel (0) target = $region9
  $region8: #{tpu_custom_call.1} parent=0 // pred_region
    _
  $region9: #{tpu_custom_call.1} parent=0 // pred_fallthru
    _
  // Predicated region
  $region10: #{tpu_custom_call.1} parent=0 // pred_check
    _
  $region11: #{tpu_custom_call.1} parent=0 // pred_check_branch
    %16 = sbr.rel (0) target = $region13
  $region12: #{tpu_custom_call.1} parent=0 // pred_region
    _
  $region13: #{tpu_custom_call.1} parent=0 // pred_fallthru
    _
  // Predicated region
  $region14: #{tpu_custom_call.1} parent=0 // pred_check
    _
  $region15: #{tpu_custom_call.1} parent=0 // pred_check_branch
    %18 = sbr.rel (0) target = $region17
  $region16: #{tpu_custom_call.1} parent=0 // pred_region
    _
  $region17: #{tpu_custom_call.1} parent=0 // pred_fallthru
    _
  // Predicated region
  $region18: #{tpu_custom_call.1} parent=0 // pred_check
    _
  $region19: #{tpu_custom_call.1} parent=0 // pred_check_branch
    %20 = sbr.rel (0) target = $region21
  $region20: #{tpu_custom_call.1} parent=0 // pred_region
    _
  $region21: #{tpu_custom_call.1} parent=0 // pred_fallthru
    _
  // Predicated region
  $region22: #{tpu_custom_call.1} parent=0 // pred_check
    _
  $region23: #{tpu_custom_call.1} parent=0 // pred_check_branch
    %22 = sbr.rel (0) target = $region25
  $region24: #{tpu_custom_call.1} parent=0 // pred_region
    _
  $region25: #{tpu_custom_call.1} parent=0 // pred_fallthru
    _
  %v23 = vld [vmem:[%s1] sm:$0xff]
  %v24 = vld [vmem:[%s1 + $0x8] sm:$0xff]
  %v25 = vld [vmem:[%s0] sm:$0xff]
  %v26 = vld [vmem:[%s0 + $0x8] sm:$0xff]
  %v27 = vld [vmem:[%s2] sm:$0xf]
  %v28 = vld [vmem:[%s3] sm:$0x1]
  %vm29 = vcmask 31744
  %v31 = vsel %vm29, %v25, 0
  %v34 = vsel %vm29, %v26, 0
  %vm36 = vcmask 1043456
  %v38 = vsel %vm36, %v27, 0
  %40 = vmatprep.subr.mxu0 0.0
  %41 = vmatpush1.msra.mxu0 0.0
  %42 = vmatprep.subr.mxu0 0.0
  %43 = vmatpush1.msra.mxu0 0.0
  %44 = vmatprep.subr.mxu0 0.0
  %45 = vmatpush1.msra.mxu0 0.0
  %46 = vmatprep.subr.mxu0 0.0
  %47 = vmatpush1.msra.mxu0 0.0
  %48 = vmatprep.subr.mxu0 0.0
  %49 = vmatpush1.msra.mxu0 0.0
  %50 = vmatprep.subr.mxu0 0.0
  %51 = vmatpush1.msra.mxu0 0.0
  %52 = vmatprep.subr.mxu0 0.0
  %53 = vmatpush1.msra.mxu0 0.0
  %54 = vmatprep.subr.mxu0 0.0
  %55 = vmatpush1.msra.mxu0 0.0
  %56 = vmatprep.subr.mxu0 0.0
  %57 = vmatpush1.msra.mxu0 0.0
  %58 = vmatprep.subr.mxu0 0.0
  %59 = vmatpush1.msra.mxu0 0.0
  %60 = vmatprep.subr.mxu0 0.0
  %61 = vmatpush1.msra.mxu0 0.0
  %62 = vmatprep.subr.mxu0 0.0
  %63 = vmatpush1.msra.mxu0 0.0
  %64 = vmatprep.subr.mxu0 0.0
  %65 = vmatpush1.msra.mxu0 0.0
  %66 = vmatprep.subr.mxu0 0.0
  %67 = vmatpush1.msra.mxu0 0.0
  %68 = vmatprep.subr.mxu0 0.0
  %69 = vmatpush1.msra.mxu0 0.0
  %70 = vmatprep.subr.mxu0 0.0
  %71 = vmatpush1.msra.mxu0 %v38
  %72 = vmatprep.subr.mxu0 0.0
  %73 = vmatpush2.msra.mxu0 0.0
  %74 = vmatprep.subr.mxu0 0.0
  %75 = vmatpush2.msra.mxu0 0.0
  %76 = vmatprep.subr.mxu0 0.0
  %77 = vmatpush2.msra.mxu0 0.0
  %78 = vmatprep.subr.mxu0 0.0
  %79 = vmatpush2.msra.mxu0 0.0
  %80 = vmatprep.subr.mxu0 0.0
  %81 = vmatpush2.msra.mxu0 0.0
  %82 = vmatprep.subr.mxu0 0.0
  %83 = vmatpush2.msra.mxu0 0.0
  %84 = vmatprep.subr.mxu0 0.0
  %85 = vmatpush2.msra.mxu0 0.0
  %86 = vmatprep.subr.mxu0 0.0
  %87 = vmatpush2.msra.mxu0 0.0
  %88 = vmatprep.subr.mxu0 0.0
  %89 = vmatpush2.msra.mxu0 0.0
  %90 = vmatprep.subr.mxu0 0.0
  %91 = vmatpush2.msra.mxu0 0.0
  %92 = vmatprep.subr.mxu0 0.0
  %93 = vmatpush2.msra.mxu0 0.0
  %94 = vmatprep.subr.mxu0 0.0
  %95 = vmatpush2.msra.mxu0 0.0
  %96 = vmatprep.subr.mxu0 0.0
  %97 = vmatpush2.msra.mxu0 0.0
  %98 = vmatprep.subr.mxu0 0.0
  %99 = vmatpush2.msra.mxu0 0.0
  %100 = vmatprep.subr.mxu0 0.0
  %101 = vmatpush2.msra.mxu0 0.0
  %102 = vmatprep.subr.mxu0 0.0
  %103 = vmatpush2.msra.mxu0 0.0
  %104 = vmatprep.mubr.f32.mxu0 0.0
  %105 = vmatmul.mubr.f32.gmra.mxu0 %v31
  %v106 = vpop.f32.mrf.mxu0
  %v107 = vadd.f32 0.0, %v106
  %v108 = vpop.f32.mrf.mxu0
  %109 = vmatprep.mubr.f32.mxu0 0.0
  %110 = vmatmul.mubr.f32.gmra.mxu0 %v34
  %v111 = vpop.f32.mrf.mxu0
  %v112 = vadd.f32 0.0, %v111
  %v113 = vpop.f32.mrf.mxu0
  %114 = vdwg.mxu0
  %117 = vrot.lane.b32.xlu0 %v107, 96
  %v118 = vpop.permute.xlu0 %117
  %119 = vrot.lane.b32.xlu0 %v112, 96
  %v120 = vpop.permute.xlu0 %119
  %123 = vxpose.xlu0.b32.start [1/16] %v118, 128
  %124 = vxpose.xlu0.b32.cont [2/16] %v120, 128
  %125 = vxpose.xlu0.b32.cont [3/16] 0.0, 128
  %126 = vxpose.xlu0.b32.cont [4/16] 0.0, 128
  %127 = vxpose.xlu0.b32.cont [5/16] 0.0, 128
  %128 = vxpose.xlu0.b32.cont [6/16] 0.0, 128
  %129 = vxpose.xlu0.b32.cont [7/16] 0.0, 128
  %130 = vxpose.xlu0.b32.cont [8/16] 0.0, 128
  %131 = vxpose.xlu0.b32.cont [9/16] 0.0, 128
  %132 = vxpose.xlu0.b32.cont [10/16] 0.0, 128
  %133 = vxpose.xlu0.b32.cont [11/16] 0.0, 128
  %134 = vxpose.xlu0.b32.cont [12/16] 0.0, 128
  %135 = vxpose.xlu0.b32.cont [13/16] 0.0, 128
  %136 = vxpose.xlu0.b32.cont [14/16] 0.0, 128
  %137 = vxpose.xlu0.b32.cont [15/16] 0.0, 128
  %138 = vxpose.xlu0.b32.end [16/16] 0.0, 128
  %v139 = vpop.trf.xlu0
  %v140 = vpop.trf.xlu0
  %v141 = vpop.trf.xlu0
  %v142 = vpop.trf.xlu0
  %v143 = vpop.trf.xlu0
  %v144 = vpop.trf.xlu0
  %v145 = vpop.trf.xlu0
  %v146 = vpop.trf.xlu0
  %v147 = vpop.trf.xlu0
  %v148 = vpop.trf.xlu0
  %v149 = vpop.trf.xlu0
  %v150 = vpop.trf.xlu0
  %v151 = vpop.trf.xlu0
  %v152 = vpop.trf.xlu0
  %v153 = vpop.trf.xlu0
  %v154 = vpop.trf.xlu0
  %155 = vrot.lane.b32.xlu0 %v107, 94
  %v156 = vpop.permute.xlu0 %155
  %157 = vrot.lane.b32.xlu0 %v112, 94
  %v158 = vpop.permute.xlu0 %157
  %161 = vxpose.xlu0.b32.start [1/16] %v156, 128
  %162 = vxpose.xlu0.b32.cont [2/16] %v158, 128
  %163 = vxpose.xlu0.b32.cont [3/16] 0.0, 128
  %164 = vxpose.xlu0.b32.cont [4/16] 0.0, 128
  %165 = vxpose.xlu0.b32.cont [5/16] 0.0, 128
  %166 = vxpose.xlu0.b32.cont [6/16] 0.0, 128
  %167 = vxpose.xlu0.b32.cont [7/16] 0.0, 128
  %168 = vxpose.xlu0.b32.cont [8/16] 0.0, 128
  %169 = vxpose.xlu0.b32.cont [9/16] 0.0, 128
  %170 = vxpose.xlu0.b32.cont [10/16] 0.0, 128
  %171 = vxpose.xlu0.b32.cont [11/16] 0.0, 128
  %172 = vxpose.xlu0.b32.cont [12/16] 0.0, 128
  %173 = vxpose.xlu0.b32.cont [13/16] 0.0, 128
  %174 = vxpose.xlu0.b32.cont [14/16] 0.0, 128
  %175 = vxpose.xlu0.b32.cont [15/16] 0.0, 128
  %176 = vxpose.xlu0.b32.end [16/16] 0.0, 128
  %v177 = vpop.trf.xlu0
  %v178 = vpop.trf.xlu0
  %v179 = vpop.trf.xlu0
  %v180 = vpop.trf.xlu0
  %v181 = vpop.trf.xlu0
  %v182 = vpop.trf.xlu0
  %v183 = vpop.trf.xlu0
  %v184 = vpop.trf.xlu0
  %v185 = vpop.trf.xlu0
  %v186 = vpop.trf.xlu0
  %v187 = vpop.trf.xlu0
  %v188 = vpop.trf.xlu0
  %v189 = vpop.trf.xlu0
  %v190 = vpop.trf.xlu0
  %v191 = vpop.trf.xlu0
  %v192 = vpop.trf.xlu0
  %v193 = vlaneseq
  %v194 = vshrl.u32 %v193, 7
  %v195 = vsub.s32 0, %v194
  %v196 = vrot.slane %v139, %v195
  %198 = vbcast.lane.b32.xlu0 %v196, 256
  %v199 = vpop.permute.xlu0 %198
  %s201 = sor.u32 256, 8
  %202 = vbcast.lane.b32.xlu0 %v196, %s201
  %v203 = vpop.permute.xlu0 %202
  %v204 = vlaneseq
  %v205 = vshrl.u32 %v204, 7
  %v206 = vsub.s32 1, %v205
  %v207 = vrot.slane %v139, %v206
  %209 = vbcast.lane.b32.xlu0 %v207, 256
  %v210 = vpop.permute.xlu0 %209
  %s212 = sor.u32 256, 8
  %213 = vbcast.lane.b32.xlu0 %v207, %s212
  %v214 = vpop.permute.xlu0 %213
  %v217 = vunpack.c.l.s4 1966171168
  %v218 = vunpack.c.0.s8 %v217
  %v219 = vlaneseq
  %v220 = vshrl.u32 %v219, 7
  %v221 = vsub.s32 %v218, %v220
  %v222 = vrot.slane %v177, %v221
  %v223 = vcombine.high %v222, %v222
  %v225 = vunpack.c.l.s4 1966171168
  %v226 = vunpack.c.0.s8 %v225
  %v227 = vlaneseq
  %v228 = vshrl.u32 %v227, 7
  %v229 = vsub.s32 %v226, %v228
  %v230 = vrot.slane %v222, %v229
  %v232 = vunpack.c.l.s4 1966171168
  %v233 = vunpack.c.0.s8 %v232
  %v234 = vlaneseq
  %v235 = vshrl.u32 %v234, 7
  %v236 = vsub.s32 %v233, %v235
  %v237 = vrot.slane %v223, %v236
  %v238 = vlaneseq
  %v239 = vshrl.u32 %v238, 7
  %v240 = vsub.s32 0, %v239
  %v241 = vrot.slane %v230, %v240
  %v242 = vlaneseq
  %v243 = vshrl.u32 %v242, 7
  %v244 = vsub.s32 0, %v243
  %v245 = vrot.slane %v237, %v244
  %v248 = vadd.f32 %v199, %v241
  %v249 = vadd.f32 %v203, %v241
  %v250 = vadd.f32 %v210, %v245
  %v251 = vadd.f32 %v214, %v245
  %vm252 = vcmp.ge.f32.partialorder %v248, 0.0
  %vm253 = vcmp.ge.f32.partialorder %v249, 0.0
  %vm254 = vcmp.ge.f32.partialorder %v250, 0.0
  %vm255 = vcmp.ge.f32.partialorder %v251, 0.0
  %v256 = vmul.f32 %v248, 0.2
  %v257 = vmul.f32 %v249, 0.2
  %v258 = vmul.f32 %v250, 0.2
  %v259 = vmul.f32 %v251, 0.2
  %v260 = vsel %vm252, %v248, %v256
  %v261 = vsel %vm253, %v249, %v257
  %v262 = vsel %vm254, %v250, %v258
  %v263 = vsel %vm255, %v251, %v259
  %vm264 = vcmp.gt.f32.partialorder %v23, 0.0
  %vm265 = vcmp.gt.f32.partialorder %v24, 0.0
  %v266 = vsel %vm264, 1, 0
  %v267 = vsel %vm265, 1, 0
  %vm268 = vcmp.eq.s32.totalorder %v266, 1
  %vm269 = vcmp.eq.s32.totalorder %v267, 1
  %v270 = vsel %vm268, %v260, -1e+09
  %v271 = vsel %vm269, %v261, -1e+09
  %v272 = vsel %vm268, %v262, -1e+09
  %v273 = vsel %vm269, %v263, -1e+09
  %vm274 = vcmask 130048
  %v275 = vsel %vm274, %v270, -inf
  %276 = vmax.xlane.f32.xlu0 %v275
  %v277 = vpop.xlane.xlu0 %276
  %v278 = vsel %vm274, %v271, -inf
  %279 = vmax.xlane.f32.xlu0 %v278
  %v280 = vpop.xlane.xlu0 %279
  %v281 = vsel %vm274, %v272, -inf
  %282 = vmax.xlane.f32.xlu0 %v281
  %v283 = vpop.xlane.xlu0 %282
  %v284 = vsel %vm274, %v273, -inf
  %285 = vmax.xlane.f32.xlu0 %v284
  %v286 = vpop.xlane.xlu0 %285
  %v287 = vsub.f32 %v270, %v277
  %v288 = vsub.f32 %v271, %v280
  %v289 = vsub.f32 %v272, %v283
  %v290 = vsub.f32 %v273, %v286
  %v291 = vmul.f32 %v287, 1.442695
  %v292 = vpow.pop %v291
  %v293 = vmul.f32 %v288, 1.442695
  %v294 = vpow.pop %v293
  %v295 = vmul.f32 %v289, 1.442695
  %v296 = vpow.pop %v295
  %v297 = vmul.f32 %v290, 1.442695
  %v298 = vpow.pop %v297
  %v299 = vsel %vm274, %v292, 0.0
  %300 = vadd.xlane.f32.xlu0 %v299
  %v301 = vpop.xlane.xlu0 %300
  %v302 = vsel %vm274, %v294, 0.0
  %303 = vadd.xlane.f32.xlu0 %v302
  %v304 = vpop.xlane.xlu0 %303
  %v305 = vsel %vm274, %v296, 0.0
  %306 = vadd.xlane.f32.xlu0 %v305
  %v307 = vpop.xlane.xlu0 %306
  %v308 = vsel %vm274, %v298, 0.0
  %309 = vadd.xlane.f32.xlu0 %v308
  %v310 = vpop.xlane.xlu0 %309
  %v311 = vrcp.pop %v301
  %v312 = vmul.f32 %v292, %v311
  %v313 = vrcp.pop %v304
  %v314 = vmul.f32 %v294, %v313
  %v315 = vrcp.pop %v307
  %v316 = vmul.f32 %v296, %v315
  %v317 = vrcp.pop %v310
  %v318 = vmul.f32 %v298, %v317
  %319 = vrot.lane.b32.xlu0 %v107, 112
  %v320 = vpop.permute.xlu0 %319
  %321 = vrot.lane.b32.xlu0 %v112, 112
  %v322 = vpop.permute.xlu0 %321
  %v325 = vcombine.high %v107, 0.0
  %v327 = vunpack.c.l.s4 1983009808
  %v328 = vunpack.c.0.s8 %v327
  %v329 = vlaneseq
  %v330 = vshrl.u32 %v329, 7
  %v331 = vsub.s32 %v328, %v330
  %v332 = vrot.slane %v107, %v331
  %v334 = vunpack.c.l.s4 1983009808
  %v335 = vunpack.c.0.s8 %v334
  %v336 = vlaneseq
  %v337 = vshrl.u32 %v336, 7
  %v338 = vsub.s32 %v335, %v337
  %v339 = vrot.slane %v325, %v338
  %v340 = vcombine.high %v320, 0.0
  %v342 = vunpack.c.l.s4 1983009808
  %v343 = vunpack.c.0.s8 %v342
  %v344 = vlaneseq
  %v345 = vshrl.u32 %v344, 7
  %v346 = vsub.s32 %v343, %v345
  %v347 = vrot.slane %v320, %v346
  %v349 = vunpack.c.l.s4 1983009808
  %v350 = vunpack.c.0.s8 %v349
  %v351 = vlaneseq
  %v352 = vshrl.u32 %v351, 7
  %v353 = vsub.s32 %v350, %v352
  %v354 = vrot.slane %v340, %v353
  %v355 = vcombine.low %v332, %v347
  %v356 = vcombine.high %v332, %v347
  %v358 = vunpack.c.l.s4 1934713408
  %v359 = vunpack.c.0.s8 %v358
  %v360 = vlaneseq
  %v361 = vshrl.u32 %v360, 7
  %v362 = vsub.s32 %v359, %v361
  %v363 = vrot.slane %v355, %v362
  %v365 = vunpack.c.l.s4 1934713408
  %v366 = vunpack.c.0.s8 %v365
  %v367 = vlaneseq
  %v368 = vshrl.u32 %v367, 7
  %v369 = vsub.s32 %v366, %v368
  %v370 = vrot.slane %v356, %v369
  %v371 = vcombine.low %v339, %v354
  %v372 = vcombine.high %v339, %v354
  %v374 = vunpack.c.l.s4 1934713408
  %v375 = vunpack.c.0.s8 %v374
  %v376 = vlaneseq
  %v377 = vshrl.u32 %v376, 7
  %v378 = vsub.s32 %v375, %v377
  %v379 = vrot.slane %v371, %v378
  %v381 = vunpack.c.l.s4 1934713408
  %v382 = vunpack.c.0.s8 %v381
  %v383 = vlaneseq
  %v384 = vshrl.u32 %v383, 7
  %v385 = vsub.s32 %v382, %v384
  %v386 = vrot.slane %v372, %v385
  %v387 = vcombine.high %v363, 0.0
  %v388 = vcombine.high %v370, 0.0
  %v389 = vcombine.high %v379, 0.0
  %v390 = vcombine.high %v386, 0.0
  %v391 = vcombine.high %v112, 0.0
  %v393 = vunpack.c.l.s4 1983009808
  %v394 = vunpack.c.0.s8 %v393
  %v395 = vlaneseq
  %v396 = vshrl.u32 %v395, 7
  %v397 = vsub.s32 %v394, %v396
  %v398 = vrot.slane %v112, %v397
  %v400 = vunpack.c.l.s4 1983009808
  %v401 = vunpack.c.0.s8 %v400
  %v402 = vlaneseq
  %v403 = vshrl.u32 %v402, 7
  %v404 = vsub.s32 %v401, %v403
  %v405 = vrot.slane %v391, %v404
  %v406 = vcombine.high %v322, 0.0
  %v408 = vunpack.c.l.s4 1983009808
  %v409 = vunpack.c.0.s8 %v408
  %v410 = vlaneseq
  %v411 = vshrl.u32 %v410, 7
  %v412 = vsub.s32 %v409, %v411
  %v413 = vrot.slane %v322, %v412
  %v415 = vunpack.c.l.s4 1983009808
  %v416 = vunpack.c.0.s8 %v415
  %v417 = vlaneseq
  %v418 = vshrl.u32 %v417, 7
  %v419 = vsub.s32 %v416, %v418
  %v420 = vrot.slane %v406, %v419
  %v421 = vcombine.low %v398, %v413
  %v422 = vcombine.high %v398, %v413
  %v424 = vunpack.c.l.s4 1934713408
  %v425 = vunpack.c.0.s8 %v424
  %v426 = vlaneseq
  %v427 = vshrl.u32 %v426, 7
  %v428 = vsub.s32 %v425, %v427
  %v429 = vrot.slane %v421, %v428
  %v431 = vunpack.c.l.s4 1934713408
  %v432 = vunpack.c.0.s8 %v431
  %v433 = vlaneseq
  %v434 = vshrl.u32 %v433, 7
  %v435 = vsub.s32 %v432, %v434
  %v436 = vrot.slane %v422, %v435
  %v437 = vcombine.low %v405, %v420
  %v438 = vcombine.high %v405, %v420
  %v440 = vunpack.c.l.s4 1934713408
  %v441 = vunpack.c.0.s8 %v440
  %v442 = vlaneseq
  %v443 = vshrl.u32 %v442, 7
  %v444 = vsub.s32 %v441, %v443
  %v445 = vrot.slane %v437, %v444
  %v447 = vunpack.c.l.s4 1934713408
  %v448 = vunpack.c.0.s8 %v447
  %v449 = vlaneseq
  %v450 = vshrl.u32 %v449, 7
  %v451 = vsub.s32 %v448, %v450
  %v452 = vrot.slane %v438, %v451
  %v453 = vcombine.high %v429, 0.0
  %v454 = vcombine.high %v436, 0.0
  %v455 = vcombine.high %v445, 0.0
  %v456 = vcombine.high %v452, 0.0
  %v457 = vcombine.low %v363, %v370
  %v459 = vunpack.c.l.s4 1983009808
  %v460 = vunpack.c.0.s8 %v459
  %v461 = vlaneseq
  %v462 = vshrl.u32 %v461, 7
  %v463 = vsub.s32 %v460, %v462
  %v464 = vrot.slane %v457, %v463
  %v465 = vcombine.low %v387, %v388
  %v467 = vunpack.c.l.s4 1983009808
  %v468 = vunpack.c.0.s8 %v467
  %v469 = vlaneseq
  %v470 = vshrl.u32 %v469, 7
  %v471 = vsub.s32 %v468, %v470
  %v472 = vrot.slane %v465, %v471
  %v473 = vcombine.low %v379, %v386
  %v475 = vunpack.c.l.s4 1983009808
  %v476 = vunpack.c.0.s8 %v475
  %v477 = vlaneseq
  %v478 = vshrl.u32 %v477, 7
  %v479 = vsub.s32 %v476, %v478
  %v480 = vrot.slane %v473, %v479
  %v481 = vcombine.low %v389, %v390
  %v483 = vunpack.c.l.s4 1983009808
  %v484 = vunpack.c.0.s8 %v483
  %v485 = vlaneseq
  %v486 = vshrl.u32 %v485, 7
  %v487 = vsub.s32 %v484, %v486
  %v488 = vrot.slane %v481, %v487
  %v489 = vcombine.low %v464, %v472
  %v491 = vunpack.c.l.s4 1934713408
  %v492 = vunpack.c.0.s8 %v491
  %v493 = vlaneseq
  %v494 = vshrl.u32 %v493, 7
  %v495 = vsub.s32 %v492, %v494
  %v496 = vrot.slane %v489, %v495
  %v497 = vcombine.low %v480, %v488
  %v499 = vunpack.c.l.s4 1934713408
  %v500 = vunpack.c.0.s8 %v499
  %v501 = vlaneseq
  %v502 = vshrl.u32 %v501, 7
  %v503 = vsub.s32 %v500, %v502
  %v504 = vrot.slane %v497, %v503
  %v505 = vcombine.low %v496, %v504
  %v506 = vcombine.high %v496, %v504
  %v507 = vcombine.low %v429, %v436
  %v509 = vunpack.c.l.s4 1983009808
  %v510 = vunpack.c.0.s8 %v509
  %v511 = vlaneseq
  %v512 = vshrl.u32 %v511, 7
  %v513 = vsub.s32 %v510, %v512
  %v514 = vrot.slane %v507, %v513
  %v515 = vcombine.low %v453, %v454
  %v517 = vunpack.c.l.s4 1983009808
  %v518 = vunpack.c.0.s8 %v517
  %v519 = vlaneseq
  %v520 = vshrl.u32 %v519, 7
  %v521 = vsub.s32 %v518, %v520
  %v522 = vrot.slane %v515, %v521
  %v523 = vcombine.low %v445, %v452
  %v525 = vunpack.c.l.s4 1983009808
  %v526 = vunpack.c.0.s8 %v525
  %v527 = vlaneseq
  %v528 = vshrl.u32 %v527, 7
  %v529 = vsub.s32 %v526, %v528
  %v530 = vrot.slane %v523, %v529
  %v531 = vcombine.low %v455, %v456
  %v533 = vunpack.c.l.s4 1983009808
  %v534 = vunpack.c.0.s8 %v533
  %v535 = vlaneseq
  %v536 = vshrl.u32 %v535, 7
  %v537 = vsub.s32 %v534, %v536
  %v538 = vrot.slane %v531, %v537
  %v539 = vcombine.low %v514, %v522
  %v541 = vunpack.c.l.s4 1934713408
  %v542 = vunpack.c.0.s8 %v541
  %v543 = vlaneseq
  %v544 = vshrl.u32 %v543, 7
  %v545 = vsub.s32 %v542, %v544
  %v546 = vrot.slane %v539, %v545
  %v547 = vcombine.low %v530, %v538
  %v549 = vunpack.c.l.s4 1934713408
  %v550 = vunpack.c.0.s8 %v549
  %v551 = vlaneseq
  %v552 = vshrl.u32 %v551, 7
  %v553 = vsub.s32 %v550, %v552
  %v554 = vrot.slane %v547, %v553
  %v555 = vcombine.low %v546, %v554
  %v556 = vcombine.high %v546, %v554
  %v558 = vsel %vm274, %v312, 0
  %v561 = vsel %vm274, %v314, 0
  %563 = vmatprep.subr.mxu0 0.0
  %564 = vmatpush1.msra.mxu0 0.0
  %565 = vmatprep.subr.mxu0 0.0
  %566 = vmatpush1.msra.mxu0 0.0
  %567 = vmatprep.subr.mxu0 0.0
  %568 = vmatpush1.msra.mxu0 0.0
  %569 = vmatprep.subr.mxu0 0.0
  %570 = vmatpush1.msra.mxu0 0.0
  %571 = vmatprep.subr.mxu0 0.0
  %572 = vmatpush1.msra.mxu0 0.0
  %573 = vmatprep.subr.mxu0 0.0
  %574 = vmatpush1.msra.mxu0 0.0
  %575 = vmatprep.subr.mxu0 0.0
  %576 = vmatpush1.msra.mxu0 0.0
  %577 = vmatprep.subr.mxu0 0.0
  %578 = vmatpush1.msra.mxu0 0.0
  %579 = vmatprep.subr.mxu0 0.0
  %580 = vmatpush1.msra.mxu0 0.0
  %581 = vmatprep.subr.mxu0 0.0
  %582 = vmatpush1.msra.mxu0 0.0
  %583 = vmatprep.subr.mxu0 0.0
  %584 = vmatpush1.msra.mxu0 0.0
  %585 = vmatprep.subr.mxu0 0.0
  %586 = vmatpush1.msra.mxu0 0.0
  %587 = vmatprep.subr.mxu0 0.0
  %588 = vmatpush1.msra.mxu0 0.0
  %589 = vmatprep.subr.mxu0 0.0
  %590 = vmatpush1.msra.mxu0 0.0
  %591 = vmatprep.subr.mxu0 0.0
  %592 = vmatpush1.msra.mxu0 %v555
  %593 = vmatprep.subr.mxu0 0.0
  %594 = vmatpush1.msra.mxu0 %v505
  %595 = vmatprep.subr.mxu0 0.0
  %596 = vmatpush2.msra.mxu0 0.0
  %597 = vmatprep.subr.mxu0 0.0
  %598 = vmatpush2.msra.mxu0 0.0
  %599 = vmatprep.subr.mxu0 0.0
  %600 = vmatpush2.msra.mxu0 0.0
  %601 = vmatprep.subr.mxu0 0.0
  %602 = vmatpush2.msra.mxu0 0.0
  %603 = vmatprep.subr.mxu0 0.0
  %604 = vmatpush2.msra.mxu0 0.0
  %605 = vmatprep.subr.mxu0 0.0
  %606 = vmatpush2.msra.mxu0 0.0
  %607 = vmatprep.subr.mxu0 0.0
  %608 = vmatpush2.msra.mxu0 0.0
  %609 = vmatprep.subr.mxu0 0.0
  %610 = vmatpush2.msra.mxu0 0.0
  %611 = vmatprep.subr.mxu0 0.0
  %612 = vmatpush2.msra.mxu0 0.0
  %613 = vmatprep.subr.mxu0 0.0
  %614 = vmatpush2.msra.mxu0 0.0
  %615 = vmatprep.subr.mxu0 0.0
  %616 = vmatpush2.msra.mxu0 0.0
  %617 = vmatprep.subr.mxu0 0.0
  %618 = vmatpush2.msra.mxu0 0.0
  %619 = vmatprep.subr.mxu0 0.0
  %620 = vmatpush2.msra.mxu0 0.0
  %621 = vmatprep.subr.mxu0 0.0
  %622 = vmatpush2.msra.mxu0 0.0
  %623 = vmatprep.subr.mxu0 0.0
  %624 = vmatpush2.msra.mxu0 0.0
  %625 = vmatprep.subr.mxu0 0.0
  %626 = vmatpush2.msra.mxu0 0.0
  %627 = vmatprep.mubr.f32.mxu0 0.0
  %628 = vmatmul.mubr.f32.gmra.mxu0 %v558
  %v629 = vpop.f32.mrf.mxu0
  %v630 = vadd.f32 0.0, %v629
  %v631 = vpop.f32.mrf.mxu0
  %632 = vmatprep.mubr.f32.mxu0 0.0
  %633 = vmatmul.mubr.f32.gmra.mxu0 %v561
  %v634 = vpop.f32.mrf.mxu0
  %v635 = vadd.f32 0.0, %v634
  %v636 = vpop.f32.mrf.mxu0
  %637 = vdwg.mxu0
  %v639 = vsel %vm274, %v316, 0
  %v642 = vsel %vm274, %v318, 0
  %644 = vmatprep.subr.mxu0 0.0
  %645 = vmatpush1.msra.mxu0 0.0
  %646 = vmatprep.subr.mxu0 0.0
  %647 = vmatpush1.msra.mxu0 0.0
  %648 = vmatprep.subr.mxu0 0.0
  %649 = vmatpush1.msra.mxu0 0.0
  %650 = vmatprep.subr.mxu0 0.0
  %651 = vmatpush1.msra.mxu0 0.0
  %652 = vmatprep.subr.mxu0 0.0
  %653 = vmatpush1.msra.mxu0 0.0
  %654 = vmatprep.subr.mxu0 0.0
  %655 = vmatpush1.msra.mxu0 0.0
  %656 = vmatprep.subr.mxu0 0.0
  %657 = vmatpush1.msra.mxu0 0.0
  %658 = vmatprep.subr.mxu0 0.0
  %659 = vmatpush1.msra.mxu0 0.0
  %660 = vmatprep.subr.mxu0 0.0
  %661 = vmatpush1.msra.mxu0 0.0
  %662 = vmatprep.subr.mxu0 0.0
  %663 = vmatpush1.msra.mxu0 0.0
  %664 = vmatprep.subr.mxu0 0.0
  %665 = vmatpush1.msra.mxu0 0.0
  %666 = vmatprep.subr.mxu0 0.0
  %667 = vmatpush1.msra.mxu0 0.0
  %668 = vmatprep.subr.mxu0 0.0
  %669 = vmatpush1.msra.mxu0 0.0
  %670 = vmatprep.subr.mxu0 0.0
  %671 = vmatpush1.msra.mxu0 0.0
  %672 = vmatprep.subr.mxu0 0.0
  %673 = vmatpush1.msra.mxu0 %v556
  %674 = vmatprep.subr.mxu0 0.0
  %675 = vmatpush1.msra.mxu0 %v506
  %676 = vmatprep.subr.mxu0 0.0
  %677 = vmatpush2.msra.mxu0 0.0
  %678 = vmatprep.subr.mxu0 0.0
  %679 = vmatpush2.msra.mxu0 0.0
  %680 = vmatprep.subr.mxu0 0.0
  %681 = vmatpush2.msra.mxu0 0.0
  %682 = vmatprep.subr.mxu0 0.0
  %683 = vmatpush2.msra.mxu0 0.0
  %684 = vmatprep.subr.mxu0 0.0
  %685 = vmatpush2.msra.mxu0 0.0
  %686 = vmatprep.subr.mxu0 0.0
  %687 = vmatpush2.msra.mxu0 0.0
  %688 = vmatprep.subr.mxu0 0.0
  %689 = vmatpush2.msra.mxu0 0.0
  %690 = vmatprep.subr.mxu0 0.0
  %691 = vmatpush2.msra.mxu0 0.0
  %692 = vmatprep.subr.mxu0 0.0
  %693 = vmatpush2.msra.mxu0 0.0
  %694 = vmatprep.subr.mxu0 0.0
  %695 = vmatpush2.msra.mxu0 0.0
  %696 = vmatprep.subr.mxu0 0.0
  %697 = vmatpush2.msra.mxu0 0.0
  %698 = vmatprep.subr.mxu0 0.0
  %699 = vmatpush2.msra.mxu0 0.0
  %700 = vmatprep.subr.mxu0 0.0
  %701 = vmatpush2.msra.mxu0 0.0
  %702 = vmatprep.subr.mxu0 0.0
  %703 = vmatpush2.msra.mxu0 0.0
  %704 = vmatprep.subr.mxu0 0.0
  %705 = vmatpush2.msra.mxu0 0.0
  %706 = vmatprep.subr.mxu0 0.0
  %707 = vmatpush2.msra.mxu0 0.0
  %708 = vmatprep.mubr.f32.mxu0 0.0
  %709 = vmatmul.mubr.f32.gmra.mxu0 %v639
  %v710 = vpop.f32.mrf.mxu0
  %v711 = vadd.f32 0.0, %v710
  %v712 = vpop.f32.mrf.mxu0
  %713 = vmatprep.mubr.f32.mxu0 0.0
  %714 = vmatmul.mubr.f32.gmra.mxu0 %v642
  %v715 = vpop.f32.mrf.mxu0
  %v716 = vadd.f32 0.0, %v715
  %v717 = vpop.f32.mrf.mxu0
  %718 = vdwg.mxu0
  %v719 = vcombine.high %v630, 0.0
  %v721 = vunpack.c.l.s4 1983009808
  %v722 = vunpack.c.0.s8 %v721
  %v723 = vlaneseq
  %v724 = vshrl.u32 %v723, 7
  %v725 = vsub.s32 %v722, %v724
  %v726 = vrot.slane %v630, %v725
  %v728 = vunpack.c.l.s4 1983009808
  %v729 = vunpack.c.0.s8 %v728
  %v730 = vlaneseq
  %v731 = vshrl.u32 %v730, 7
  %v732 = vsub.s32 %v729, %v731
  %v733 = vrot.slane %v719, %v732
  %v734 = vcombine.high %v711, 0.0
  %v736 = vunpack.c.l.s4 1983009808
  %v737 = vunpack.c.0.s8 %v736
  %v738 = vlaneseq
  %v739 = vshrl.u32 %v738, 7
  %v740 = vsub.s32 %v737, %v739
  %v741 = vrot.slane %v711, %v740
  %v743 = vunpack.c.l.s4 1983009808
  %v744 = vunpack.c.0.s8 %v743
  %v745 = vlaneseq
  %v746 = vshrl.u32 %v745, 7
  %v747 = vsub.s32 %v744, %v746
  %v748 = vrot.slane %v734, %v747
  %v749 = vcombine.low %v726, %v741
  %v750 = vcombine.high %v726, %v741
  %v752 = vunpack.c.l.s4 1934713408
  %v753 = vunpack.c.0.s8 %v752
  %v754 = vlaneseq
  %v755 = vshrl.u32 %v754, 7
  %v756 = vsub.s32 %v753, %v755
  %v757 = vrot.slane %v749, %v756
  %v759 = vunpack.c.l.s4 1934713408
  %v760 = vunpack.c.0.s8 %v759
  %v761 = vlaneseq
  %v762 = vshrl.u32 %v761, 7
  %v763 = vsub.s32 %v760, %v762
  %v764 = vrot.slane %v750, %v763
  %v765 = vcombine.low %v733, %v748
  %v766 = vcombine.high %v733, %v748
  %v768 = vunpack.c.l.s4 1934713408
  %v769 = vunpack.c.0.s8 %v768
  %v770 = vlaneseq
  %v771 = vshrl.u32 %v770, 7
  %v772 = vsub.s32 %v769, %v771
  %v773 = vrot.slane %v765, %v772
  %v775 = vunpack.c.l.s4 1934713408
  %v776 = vunpack.c.0.s8 %v775
  %v777 = vlaneseq
  %v778 = vshrl.u32 %v777, 7
  %v779 = vsub.s32 %v776, %v778
  %v780 = vrot.slane %v766, %v779
  %v781 = vcombine.high %v757, 0.0
  %v782 = vcombine.high %v764, 0.0
  %v783 = vcombine.high %v773, 0.0
  %v784 = vcombine.high %v780, 0.0
  %v785 = vcombine.high %v635, 0.0
  %v787 = vunpack.c.l.s4 1983009808
  %v788 = vunpack.c.0.s8 %v787
  %v789 = vlaneseq
  %v790 = vshrl.u32 %v789, 7
  %v791 = vsub.s32 %v788, %v790
  %v792 = vrot.slane %v635, %v791
  %v794 = vunpack.c.l.s4 1983009808
  %v795 = vunpack.c.0.s8 %v794
  %v796 = vlaneseq
  %v797 = vshrl.u32 %v796, 7
  %v798 = vsub.s32 %v795, %v797
  %v799 = vrot.slane %v785, %v798
  %v800 = vcombine.high %v716, 0.0
  %v802 = vunpack.c.l.s4 1983009808
  %v803 = vunpack.c.0.s8 %v802
  %v804 = vlaneseq
  %v805 = vshrl.u32 %v804, 7
  %v806 = vsub.s32 %v803, %v805
  %v807 = vrot.slane %v716, %v806
  %v809 = vunpack.c.l.s4 1983009808
  %v810 = vunpack.c.0.s8 %v809
  %v811 = vlaneseq
  %v812 = vshrl.u32 %v811, 7
  %v813 = vsub.s32 %v810, %v812
  %v814 = vrot.slane %v800, %v813
  %v815 = vcombine.low %v792, %v807
  %v816 = vcombine.high %v792, %v807
  %v818 = vunpack.c.l.s4 1934713408
  %v819 = vunpack.c.0.s8 %v818
  %v820 = vlaneseq
  %v821 = vshrl.u32 %v820, 7
  %v822 = vsub.s32 %v819, %v821
  %v823 = vrot.slane %v815, %v822
  %v825 = vunpack.c.l.s4 1934713408
  %v826 = vunpack.c.0.s8 %v825
  %v827 = vlaneseq
  %v828 = vshrl.u32 %v827, 7
  %v829 = vsub.s32 %v826, %v828
  %v830 = vrot.slane %v816, %v829
  %v831 = vcombine.low %v799, %v814
  %v832 = vcombine.high %v799, %v814
  %v834 = vunpack.c.l.s4 1934713408
  %v835 = vunpack.c.0.s8 %v834
  %v836 = vlaneseq
  %v837 = vshrl.u32 %v836, 7
  %v838 = vsub.s32 %v835, %v837
  %v839 = vrot.slane %v831, %v838
  %v841 = vunpack.c.l.s4 1934713408
  %v842 = vunpack.c.0.s8 %v841
  %v843 = vlaneseq
  %v844 = vshrl.u32 %v843, 7
  %v845 = vsub.s32 %v842, %v844
  %v846 = vrot.slane %v832, %v845
  %v847 = vcombine.high %v823, 0.0
  %v848 = vcombine.high %v830, 0.0
  %v849 = vcombine.high %v839, 0.0
  %v850 = vcombine.high %v846, 0.0
  %v851 = vcombine.low %v757, %v764
  %v853 = vunpack.c.l.s4 1983009808
  %v854 = vunpack.c.0.s8 %v853
  %v855 = vlaneseq
  %v856 = vshrl.u32 %v855, 7
  %v857 = vsub.s32 %v854, %v856
  %v858 = vrot.slane %v851, %v857
  %v859 = vcombine.low %v781, %v782
  %v861 = vunpack.c.l.s4 1983009808
  %v862 = vunpack.c.0.s8 %v861
  %v863 = vlaneseq
  %v864 = vshrl.u32 %v863, 7
  %v865 = vsub.s32 %v862, %v864
  %v866 = vrot.slane %v859, %v865
  %v867 = vcombine.low %v773, %v780
  %v869 = vunpack.c.l.s4 1983009808
  %v870 = vunpack.c.0.s8 %v869
  %v871 = vlaneseq
  %v872 = vshrl.u32 %v871, 7
  %v873 = vsub.s32 %v870, %v872
  %v874 = vrot.slane %v867, %v873
  %v875 = vcombine.low %v783, %v784
  %v877 = vunpack.c.l.s4 1983009808
  %v878 = vunpack.c.0.s8 %v877
  %v879 = vlaneseq
  %v880 = vshrl.u32 %v879, 7
  %v881 = vsub.s32 %v878, %v880
  %v882 = vrot.slane %v875, %v881
  %v883 = vcombine.low %v858, %v866
  %v885 = vunpack.c.l.s4 1934713408
  %v886 = vunpack.c.0.s8 %v885
  %v887 = vlaneseq
  %v888 = vshrl.u32 %v887, 7
  %v889 = vsub.s32 %v886, %v888
  %v890 = vrot.slane %v883, %v889
  %v891 = vcombine.low %v874, %v882
  %v893 = vunpack.c.l.s4 1934713408
  %v894 = vunpack.c.0.s8 %v893
  %v895 = vlaneseq
  %v896 = vshrl.u32 %v895, 7
  %v897 = vsub.s32 %v894, %v896
  %v898 = vrot.slane %v891, %v897
  %v899 = vcombine.low %v890, %v898
  %v900 = vcombine.high %v890, %v898
  %v901 = vcombine.low %v823, %v830
  %v903 = vunpack.c.l.s4 1983009808
  %v904 = vunpack.c.0.s8 %v903
  %v905 = vlaneseq
  %v906 = vshrl.u32 %v905, 7
  %v907 = vsub.s32 %v904, %v906
  %v908 = vrot.slane %v901, %v907
  %v909 = vcombine.low %v847, %v848
  %v911 = vunpack.c.l.s4 1983009808
  %v912 = vunpack.c.0.s8 %v911
  %v913 = vlaneseq
  %v914 = vshrl.u32 %v913, 7
  %v915 = vsub.s32 %v912, %v914
  %v916 = vrot.slane %v909, %v915
  %v917 = vcombine.low %v839, %v846
  %v919 = vunpack.c.l.s4 1983009808
  %v920 = vunpack.c.0.s8 %v919
  %v921 = vlaneseq
  %v922 = vshrl.u32 %v921, 7
  %v923 = vsub.s32 %v920, %v922
  %v924 = vrot.slane %v917, %v923
  %v925 = vcombine.low %v849, %v850
  %v927 = vunpack.c.l.s4 1983009808
  %v928 = vunpack.c.0.s8 %v927
  %v929 = vlaneseq
  %v930 = vshrl.u32 %v929, 7
  %v931 = vsub.s32 %v928, %v930
  %v932 = vrot.slane %v925, %v931
  %v933 = vcombine.low %v908, %v916
  %v935 = vunpack.c.l.s4 1934713408
  %v936 = vunpack.c.0.s8 %v935
  %v937 = vlaneseq
  %v938 = vshrl.u32 %v937, 7
  %v939 = vsub.s32 %v936, %v938
  %v940 = vrot.slane %v933, %v939
  %v941 = vcombine.low %v924, %v932
  %v943 = vunpack.c.l.s4 1934713408
  %v944 = vunpack.c.0.s8 %v943
  %v945 = vlaneseq
  %v946 = vshrl.u32 %v945, 7
  %v947 = vsub.s32 %v944, %v946
  %v948 = vrot.slane %v941, %v947
  %v949 = vcombine.low %v940, %v948
  %v950 = vcombine.high %v940, %v948
  %953 = vrot.lane.b32.xlu0 %v900, 16
  %v954 = vpop.permute.xlu0 %953
  %955 = vrot.lane.b32.xlu0 %v950, 16
  %v956 = vpop.permute.xlu0 %955
  %v959 = vsel %vm274, %v899, %v954
  %v960 = vsel %vm274, %v949, %v956
  %v962 = vlaneseq
  %v963 = vshrl.u32 %v962, 7
  %v964 = vsub.s32 0, %v963
  %v965 = vrot.slane %v28, %v964
  %v967 = vadd.f32 %v959, %v965
  %v968 = vadd.f32 %v960, %v965
  %v969 = vmax.f32 %v967, 0.0
  %v970 = vmax.f32 %v968, 0.0
  %v971 = vld [vmem:[%s4] sm:$0xff]
  %v972 = vld [vmem:[%s4 + $0x8] sm:$0xff]
  %v973 = vld [vmem:[%s4 + $0x10] sm:$0xff]
  %v974 = vld [vmem:[%s4 + $0x18] sm:$0xff]
  %v975 = vld [vmem:[%s5] sm:$0x1]
  %vm976 = vcmask 261120
  %v978 = vsel %vm976, %v969, 0
  %v981 = vsel %vm976, %v970, 0
  %983 = vmatprep.subr.mxu0 0.0
  %984 = vmatpush1.msra.mxu0 0.0
  %985 = vmatprep.subr.mxu0 0.0
  %986 = vmatpush1.msra.mxu0 0.0
  %987 = vmatprep.subr.mxu0 0.0
  %988 = vmatpush1.msra.mxu0 0.0
  %989 = vmatprep.subr.mxu0 0.0
  %990 = vmatpush1.msra.mxu0 0.0
  %991 = vmatprep.subr.mxu0 0.0
  %992 = vmatpush1.msra.mxu0 0.0
  %993 = vmatprep.subr.mxu0 0.0
  %994 = vmatpush1.msra.mxu0 0.0
  %995 = vmatprep.subr.mxu0 0.0
  %996 = vmatpush1.msra.mxu0 0.0
  %997 = vmatprep.subr.mxu0 0.0
  %998 = vmatpush1.msra.mxu0 0.0
  %999 = vmatprep.subr.mxu0 0.0
  %1000 = vmatpush1.msra.mxu0 0.0
  %1001 = vmatprep.subr.mxu0 0.0
  %1002 = vmatpush1.msra.mxu0 0.0
  %1003 = vmatprep.subr.mxu0 0.0
  %1004 = vmatpush1.msra.mxu0 0.0
  %1005 = vmatprep.subr.mxu0 0.0
  %1006 = vmatpush1.msra.mxu0 0.0
  %1007 = vmatprep.subr.mxu0 0.0
  %1008 = vmatpush1.msra.mxu0 %v974
  %1009 = vmatprep.subr.mxu0 0.0
  %1010 = vmatpush1.msra.mxu0 %v973
  %1011 = vmatprep.subr.mxu0 0.0
  %1012 = vmatpush1.msra.mxu0 %v972
  %1013 = vmatprep.subr.mxu0 0.0
  %1014 = vmatpush1.msra.mxu0 %v971
  %1015 = vmatprep.subr.mxu0 0.0
  %1016 = vmatpush2.msra.mxu0 0.0
  %1017 = vmatprep.subr.mxu0 0.0
  %1018 = vmatpush2.msra.mxu0 0.0
  %1019 = vmatprep.subr.mxu0 0.0
  %1020 = vmatpush2.msra.mxu0 0.0
  %1021 = vmatprep.subr.mxu0 0.0
  %1022 = vmatpush2.msra.mxu0 0.0
  %1023 = vmatprep.subr.mxu0 0.0
  %1024 = vmatpush2.msra.mxu0 0.0
  %1025 = vmatprep.subr.mxu0 0.0
  %1026 = vmatpush2.msra.mxu0 0.0
  %1027 = vmatprep.subr.mxu0 0.0
  %1028 = vmatpush2.msra.mxu0 0.0
  %1029 = vmatprep.subr.mxu0 0.0
  %1030 = vmatpush2.msra.mxu0 0.0
  %1031 = vmatprep.subr.mxu0 0.0
  %1032 = vmatpush2.msra.mxu0 0.0
  %1033 = vmatprep.subr.mxu0 0.0
  %1034 = vmatpush2.msra.mxu0 0.0
  %1035 = vmatprep.subr.mxu0 0.0
  %1036 = vmatpush2.msra.mxu0 0.0
  %1037 = vmatprep.subr.mxu0 0.0
  %1038 = vmatpush2.msra.mxu0 0.0
  %1039 = vmatprep.subr.mxu0 0.0
  %1040 = vmatpush2.msra.mxu0 0.0
  %1041 = vmatprep.subr.mxu0 0.0
  %1042 = vmatpush2.msra.mxu0 0.0
  %1043 = vmatprep.subr.mxu0 0.0
  %1044 = vmatpush2.msra.mxu0 0.0
  %1045 = vmatprep.subr.mxu0 0.0
  %1046 = vmatpush2.msra.mxu0 0.0
  %1047 = vmatprep.mubr.f32.mxu0 0.0
  %1048 = vmatmul.mubr.f32.gmra.mxu0 %v978
  %v1049 = vpop.f32.mrf.mxu0
  %v1050 = vadd.f32 0.0, %v1049
  %v1051 = vpop.f32.mrf.mxu0
  %1052 = vmatprep.mubr.f32.mxu0 0.0
  %1053 = vmatmul.mubr.f32.gmra.mxu0 %v981
  %v1054 = vpop.f32.mrf.mxu0
  %v1055 = vadd.f32 0.0, %v1054
  %v1056 = vpop.f32.mrf.mxu0
  %1057 = vdwg.mxu0
  %1060 = vrot.lane.b32.xlu0 %v1050, 120
  %v1061 = vpop.permute.xlu0 %1060
  %1062 = vrot.lane.b32.xlu0 %v1055, 120
  %v1063 = vpop.permute.xlu0 %1062
  %1066 = vxpose.xlu0.b32.start [1/16] %v1061, 128
  %1067 = vxpose.xlu0.b32.cont [2/16] %v1063, 128
  %1068 = vxpose.xlu0.b32.cont [3/16] 0.0, 128
  %1069 = vxpose.xlu0.b32.cont [4/16] 0.0, 128
  %1070 = vxpose.xlu0.b32.cont [5/16] 0.0, 128
  %1071 = vxpose.xlu0.b32.cont [6/16] 0.0, 128
  %1072 = vxpose.xlu0.b32.cont [7/16] 0.0, 128
  %1073 = vxpose.xlu0.b32.cont [8/16] 0.0, 128
  %1074 = vxpose.xlu0.b32.cont [9/16] 0.0, 128
  %1075 = vxpose.xlu0.b32.cont [10/16] 0.0, 128
  %1076 = vxpose.xlu0.b32.cont [11/16] 0.0, 128
  %1077 = vxpose.xlu0.b32.cont [12/16] 0.0, 128
  %1078 = vxpose.xlu0.b32.cont [13/16] 0.0, 128
  %1079 = vxpose.xlu0.b32.cont [14/16] 0.0, 128
  %1080 = vxpose.xlu0.b32.cont [15/16] 0.0, 128
  %1081 = vxpose.xlu0.b32.end [16/16] 0.0, 128
  %v1082 = vpop.trf.xlu0
  %v1083 = vpop.trf.xlu0
  %v1084 = vpop.trf.xlu0
  %v1085 = vpop.trf.xlu0
  %v1086 = vpop.trf.xlu0
  %v1087 = vpop.trf.xlu0
  %v1088 = vpop.trf.xlu0
  %v1089 = vpop.trf.xlu0
  %v1090 = vpop.trf.xlu0
  %v1091 = vpop.trf.xlu0
  %v1092 = vpop.trf.xlu0
  %v1093 = vpop.trf.xlu0
  %v1094 = vpop.trf.xlu0
  %v1095 = vpop.trf.xlu0
  %v1096 = vpop.trf.xlu0
  %v1097 = vpop.trf.xlu0
  %1098 = vrot.lane.b32.xlu0 %v1050, 118
  %v1099 = vpop.permute.xlu0 %1098
  %1100 = vrot.lane.b32.xlu0 %v1055, 118
  %v1101 = vpop.permute.xlu0 %1100
  %1104 = vxpose.xlu0.b32.start [1/16] %v1099, 128
  %1105 = vxpose.xlu0.b32.cont [2/16] %v1101, 128
  %1106 = vxpose.xlu0.b32.cont [3/16] 0.0, 128
  %1107 = vxpose.xlu0.b32.cont [4/16] 0.0, 128
  %1108 = vxpose.xlu0.b32.cont [5/16] 0.0, 128
  %1109 = vxpose.xlu0.b32.cont [6/16] 0.0, 128
  %1110 = vxpose.xlu0.b32.cont [7/16] 0.0, 128
  %1111 = vxpose.xlu0.b32.cont [8/16] 0.0, 128
  %1112 = vxpose.xlu0.b32.cont [9/16] 0.0, 128
  %1113 = vxpose.xlu0.b32.cont [10/16] 0.0, 128
  %1114 = vxpose.xlu0.b32.cont [11/16] 0.0, 128
  %1115 = vxpose.xlu0.b32.cont [12/16] 0.0, 128
  %1116 = vxpose.xlu0.b32.cont [13/16] 0.0, 128
  %1117 = vxpose.xlu0.b32.cont [14/16] 0.0, 128
  %1118 = vxpose.xlu0.b32.cont [15/16] 0.0, 128
  %1119 = vxpose.xlu0.b32.end [16/16] 0.0, 128
  %v1120 = vpop.trf.xlu0
  %v1121 = vpop.trf.xlu0
  %v1122 = vpop.trf.xlu0
  %v1123 = vpop.trf.xlu0
  %v1124 = vpop.trf.xlu0
  %v1125 = vpop.trf.xlu0
  %v1126 = vpop.trf.xlu0
  %v1127 = vpop.trf.xlu0
  %v1128 = vpop.trf.xlu0
  %v1129 = vpop.trf.xlu0
  %v1130 = vpop.trf.xlu0
  %v1131 = vpop.trf.xlu0
  %v1132 = vpop.trf.xlu0
  %v1133 = vpop.trf.xlu0
  %v1134 = vpop.trf.xlu0
  %v1135 = vpop.trf.xlu0
  %v1136 = vlaneseq
  %v1137 = vshrl.u32 %v1136, 7
  %v1138 = vsub.s32 0, %v1137
  %v1139 = vrot.slane %v1082, %v1138
  %1141 = vbcast.lane.b32.xlu0 %v1139, 256
  %v1142 = vpop.permute.xlu0 %1141
  %s1144 = sor.u32 256, 8
  %1145 = vbcast.lane.b32.xlu0 %v1139, %s1144
  %v1146 = vpop.permute.xlu0 %1145
  %v1147 = vlaneseq
  %v1148 = vshrl.u32 %v1147, 7
  %v1149 = vsub.s32 1, %v1148
  %v1150 = vrot.slane %v1082, %v1149
  %1152 = vbcast.lane.b32.xlu0 %v1150, 256
  %v1153 = vpop.permute.xlu0 %1152
  %s1155 = sor.u32 256, 8
  %1156 = vbcast.lane.b32.xlu0 %v1150, %s1155
  %v1157 = vpop.permute.xlu0 %1156
  %v1160 = vunpack.c.l.s4 1966171168
  %v1161 = vunpack.c.0.s8 %v1160
  %v1162 = vlaneseq
  %v1163 = vshrl.u32 %v1162, 7
  %v1164 = vsub.s32 %v1161, %v1163
  %v1165 = vrot.slane %v1120, %v1164
  %v1166 = vcombine.high %v1165, %v1165
  %v1168 = vunpack.c.l.s4 1966171168
  %v1169 = vunpack.c.0.s8 %v1168
  %v1170 = vlaneseq
  %v1171 = vshrl.u32 %v1170, 7
  %v1172 = vsub.s32 %v1169, %v1171
  %v1173 = vrot.slane %v1165, %v1172
  %v1175 = vunpack.c.l.s4 1966171168
  %v1176 = vunpack.c.0.s8 %v1175
  %v1177 = vlaneseq
  %v1178 = vshrl.u32 %v1177, 7
  %v1179 = vsub.s32 %v1176, %v1178
  %v1180 = vrot.slane %v1166, %v1179
  %v1181 = vlaneseq
  %v1182 = vshrl.u32 %v1181, 7
  %v1183 = vsub.s32 0, %v1182
  %v1184 = vrot.slane %v1173, %v1183
  %v1185 = vlaneseq
  %v1186 = vshrl.u32 %v1185, 7
  %v1187 = vsub.s32 0, %v1186
  %v1188 = vrot.slane %v1180, %v1187
  %v1191 = vadd.f32 %v1142, %v1184
  %v1192 = vadd.f32 %v1146, %v1184
  %v1193 = vadd.f32 %v1153, %v1188
  %v1194 = vadd.f32 %v1157, %v1188
  %vm1195 = vcmp.ge.f32.partialorder %v1191, 0.0
  %vm1196 = vcmp.ge.f32.partialorder %v1192, 0.0
  %vm1197 = vcmp.ge.f32.partialorder %v1193, 0.0
  %vm1198 = vcmp.ge.f32.partialorder %v1194, 0.0
  %v1199 = vmul.f32 %v1191, 0.2
  %v1200 = vmul.f32 %v1192, 0.2
  %v1201 = vmul.f32 %v1193, 0.2
  %v1202 = vmul.f32 %v1194, 0.2
  %v1203 = vsel %vm1195, %v1191, %v1199
  %v1204 = vsel %vm1196, %v1192, %v1200
  %v1205 = vsel %vm1197, %v1193, %v1201
  %v1206 = vsel %vm1198, %v1194, %v1202
  %v1207 = vsel %vm268, %v1203, -1e+09
  %v1208 = vsel %vm269, %v1204, -1e+09
  %v1209 = vsel %vm268, %v1205, -1e+09
  %v1210 = vsel %vm269, %v1206, -1e+09
  %v1211 = vsel %vm274, %v1207, -inf
  %1212 = vmax.xlane.f32.xlu0 %v1211
  %v1213 = vpop.xlane.xlu0 %1212
  %v1214 = vsel %vm274, %v1208, -inf
  %1215 = vmax.xlane.f32.xlu0 %v1214
  %v1216 = vpop.xlane.xlu0 %1215
  %v1217 = vsel %vm274, %v1209, -inf
  %1218 = vmax.xlane.f32.xlu0 %v1217
  %v1219 = vpop.xlane.xlu0 %1218
  %v1220 = vsel %vm274, %v1210, -inf
  %1221 = vmax.xlane.f32.xlu0 %v1220
  %v1222 = vpop.xlane.xlu0 %1221
  %v1223 = vsub.f32 %v1207, %v1213
  %v1224 = vsub.f32 %v1208, %v1216
  %v1225 = vsub.f32 %v1209, %v1219
  %v1226 = vsub.f32 %v1210, %v1222
  %v1227 = vmul.f32 %v1223, 1.442695
  %v1228 = vpow.pop %v1227
  %v1229 = vmul.f32 %v1224, 1.442695
  %v1230 = vpow.pop %v1229
  %v1231 = vmul.f32 %v1225, 1.442695
  %v1232 = vpow.pop %v1231
  %v1233 = vmul.f32 %v1226, 1.442695
  %v1234 = vpow.pop %v1233
  %v1235 = vsel %vm274, %v1228, 0.0
  %1236 = vadd.xlane.f32.xlu0 %v1235
  %v1237 = vpop.xlane.xlu0 %1236
  %v1238 = vsel %vm274, %v1230, 0.0
  %1239 = vadd.xlane.f32.xlu0 %v1238
  %v1240 = vpop.xlane.xlu0 %1239
  %v1241 = vsel %vm274, %v1232, 0.0
  %1242 = vadd.xlane.f32.xlu0 %v1241
  %v1243 = vpop.xlane.xlu0 %1242
  %v1244 = vsel %vm274, %v1234, 0.0
  %1245 = vadd.xlane.f32.xlu0 %v1244
  %v1246 = vpop.xlane.xlu0 %1245
  %v1247 = vrcp.pop %v1237
  %v1248 = vmul.f32 %v1228, %v1247
  %v1249 = vrcp.pop %v1240
  %v1250 = vmul.f32 %v1230, %v1249
  %v1251 = vrcp.pop %v1243
  %v1252 = vmul.f32 %v1232, %v1251
  %v1253 = vrcp.pop %v1246
  %v1254 = vmul.f32 %v1234, %v1253
  %1255 = vrot.lane.b32.xlu0 %v1050, 124
  %v1256 = vpop.permute.xlu0 %1255
  %1257 = vrot.lane.b32.xlu0 %v1055, 124
  %v1258 = vpop.permute.xlu0 %1257
  %v1261 = vcombine.high %v1050, 0.0
  %v1263 = vunpack.c.l.s4 1983009808
  %v1264 = vunpack.c.0.s8 %v1263
  %v1265 = vlaneseq
  %v1266 = vshrl.u32 %v1265, 7
  %v1267 = vsub.s32 %v1264, %v1266
  %v1268 = vrot.slane %v1050, %v1267
  %v1270 = vunpack.c.l.s4 1983009808
  %v1271 = vunpack.c.0.s8 %v1270
  %v1272 = vlaneseq
  %v1273 = vshrl.u32 %v1272, 7
  %v1274 = vsub.s32 %v1271, %v1273
  %v1275 = vrot.slane %v1261, %v1274
  %v1276 = vcombine.high %v1256, 0.0
  %v1278 = vunpack.c.l.s4 1983009808
  %v1279 = vunpack.c.0.s8 %v1278
  %v1280 = vlaneseq
  %v1281 = vshrl.u32 %v1280, 7
  %v1282 = vsub.s32 %v1279, %v1281
  %v1283 = vrot.slane %v1256, %v1282
  %v1285 = vunpack.c.l.s4 1983009808
  %v1286 = vunpack.c.0.s8 %v1285
  %v1287 = vlaneseq
  %v1288 = vshrl.u32 %v1287, 7
  %v1289 = vsub.s32 %v1286, %v1288
  %v1290 = vrot.slane %v1276, %v1289
  %v1291 = vcombine.low %v1268, %v1283
  %v1292 = vcombine.high %v1268, %v1283
  %v1294 = vunpack.c.l.s4 1934713408
  %v1295 = vunpack.c.0.s8 %v1294
  %v1296 = vlaneseq
  %v1297 = vshrl.u32 %v1296, 7
  %v1298 = vsub.s32 %v1295, %v1297
  %v1299 = vrot.slane %v1291, %v1298
  %v1301 = vunpack.c.l.s4 1934713408
  %v1302 = vunpack.c.0.s8 %v1301
  %v1303 = vlaneseq
  %v1304 = vshrl.u32 %v1303, 7
  %v1305 = vsub.s32 %v1302, %v1304
  %v1306 = vrot.slane %v1292, %v1305
  %v1307 = vcombine.low %v1275, %v1290
  %v1308 = vcombine.high %v1275, %v1290
  %v1310 = vunpack.c.l.s4 1934713408
  %v1311 = vunpack.c.0.s8 %v1310
  %v1312 = vlaneseq
  %v1313 = vshrl.u32 %v1312, 7
  %v1314 = vsub.s32 %v1311, %v1313
  %v1315 = vrot.slane %v1307, %v1314
  %v1317 = vunpack.c.l.s4 1934713408
  %v1318 = vunpack.c.0.s8 %v1317
  %v1319 = vlaneseq
  %v1320 = vshrl.u32 %v1319, 7
  %v1321 = vsub.s32 %v1318, %v1320
  %v1322 = vrot.slane %v1308, %v1321
  %v1323 = vcombine.high %v1299, 0.0
  %v1324 = vcombine.high %v1306, 0.0
  %v1325 = vcombine.high %v1315, 0.0
  %v1326 = vcombine.high %v1322, 0.0
  %v1327 = vcombine.high %v1055, 0.0
  %v1329 = vunpack.c.l.s4 1983009808
  %v1330 = vunpack.c.0.s8 %v1329
  %v1331 = vlaneseq
  %v1332 = vshrl.u32 %v1331, 7
  %v1333 = vsub.s32 %v1330, %v1332
  %v1334 = vrot.slane %v1055, %v1333
  %v1336 = vunpack.c.l.s4 1983009808
  %v1337 = vunpack.c.0.s8 %v1336
  %v1338 = vlaneseq
  %v1339 = vshrl.u32 %v1338, 7
  %v1340 = vsub.s32 %v1337, %v1339
  %v1341 = vrot.slane %v1327, %v1340
  %v1342 = vcombine.high %v1258, 0.0
  %v1344 = vunpack.c.l.s4 1983009808
  %v1345 = vunpack.c.0.s8 %v1344
  %v1346 = vlaneseq
  %v1347 = vshrl.u32 %v1346, 7
  %v1348 = vsub.s32 %v1345, %v1347
  %v1349 = vrot.slane %v1258, %v1348
  %v1351 = vunpack.c.l.s4 1983009808
  %v1352 = vunpack.c.0.s8 %v1351
  %v1353 = vlaneseq
  %v1354 = vshrl.u32 %v1353, 7
  %v1355 = vsub.s32 %v1352, %v1354
  %v1356 = vrot.slane %v1342, %v1355
  %v1357 = vcombine.low %v1334, %v1349
  %v1358 = vcombine.high %v1334, %v1349
  %v1360 = vunpack.c.l.s4 1934713408
  %v1361 = vunpack.c.0.s8 %v1360
  %v1362 = vlaneseq
  %v1363 = vshrl.u32 %v1362, 7
  %v1364 = vsub.s32 %v1361, %v1363
  %v1365 = vrot.slane %v1357, %v1364
  %v1367 = vunpack.c.l.s4 1934713408
  %v1368 = vunpack.c.0.s8 %v1367
  %v1369 = vlaneseq
  %v1370 = vshrl.u32 %v1369, 7
  %v1371 = vsub.s32 %v1368, %v1370
  %v1372 = vrot.slane %v1358, %v1371
  %v1373 = vcombine.low %v1341, %v1356
  %v1374 = vcombine.high %v1341, %v1356
  %v1376 = vunpack.c.l.s4 1934713408
  %v1377 = vunpack.c.0.s8 %v1376
  %v1378 = vlaneseq
  %v1379 = vshrl.u32 %v1378, 7
  %v1380 = vsub.s32 %v1377, %v1379
  %v1381 = vrot.slane %v1373, %v1380
  %v1383 = vunpack.c.l.s4 1934713408
  %v1384 = vunpack.c.0.s8 %v1383
  %v1385 = vlaneseq
  %v1386 = vshrl.u32 %v1385, 7
  %v1387 = vsub.s32 %v1384, %v1386
  %v1388 = vrot.slane %v1374, %v1387
  %v1389 = vcombine.high %v1365, 0.0
  %v1390 = vcombine.high %v1372, 0.0
  %v1391 = vcombine.high %v1381, 0.0
  %v1392 = vcombine.high %v1388, 0.0
  %v1393 = vcombine.low %v1299, %v1306
  %v1395 = vunpack.c.l.s4 1983009808
  %v1396 = vunpack.c.0.s8 %v1395
  %v1397 = vlaneseq
  %v1398 = vshrl.u32 %v1397, 7
  %v1399 = vsub.s32 %v1396, %v1398
  %v1400 = vrot.slane %v1393, %v1399
  %v1401 = vcombine.low %v1323, %v1324
  %v1403 = vunpack.c.l.s4 1983009808
  %v1404 = vunpack.c.0.s8 %v1403
  %v1405 = vlaneseq
  %v1406 = vshrl.u32 %v1405, 7
  %v1407 = vsub.s32 %v1404, %v1406
  %v1408 = vrot.slane %v1401, %v1407
  %v1409 = vcombine.low %v1315, %v1322
  %v1411 = vunpack.c.l.s4 1983009808
  %v1412 = vunpack.c.0.s8 %v1411
  %v1413 = vlaneseq
  %v1414 = vshrl.u32 %v1413, 7
  %v1415 = vsub.s32 %v1412, %v1414
  %v1416 = vrot.slane %v1409, %v1415
  %v1417 = vcombine.low %v1325, %v1326
  %v1419 = vunpack.c.l.s4 1983009808
  %v1420 = vunpack.c.0.s8 %v1419
  %v1421 = vlaneseq
  %v1422 = vshrl.u32 %v1421, 7
  %v1423 = vsub.s32 %v1420, %v1422
  %v1424 = vrot.slane %v1417, %v1423
  %v1425 = vcombine.low %v1400, %v1408
  %v1427 = vunpack.c.l.s4 1934713408
  %v1428 = vunpack.c.0.s8 %v1427
  %v1429 = vlaneseq
  %v1430 = vshrl.u32 %v1429, 7
  %v1431 = vsub.s32 %v1428, %v1430
  %v1432 = vrot.slane %v1425, %v1431
  %v1433 = vcombine.low %v1416, %v1424
  %v1435 = vunpack.c.l.s4 1934713408
  %v1436 = vunpack.c.0.s8 %v1435
  %v1437 = vlaneseq
  %v1438 = vshrl.u32 %v1437, 7
  %v1439 = vsub.s32 %v1436, %v1438
  %v1440 = vrot.slane %v1433, %v1439
  %v1441 = vcombine.low %v1432, %v1440
  %v1442 = vcombine.high %v1432, %v1440
  %v1443 = vcombine.low %v1365, %v1372
  %v1445 = vunpack.c.l.s4 1983009808
  %v1446 = vunpack.c.0.s8 %v1445
  %v1447 = vlaneseq
  %v1448 = vshrl.u32 %v1447, 7
  %v1449 = vsub.s32 %v1446, %v1448
  %v1450 = vrot.slane %v1443, %v1449
  %v1451 = vcombine.low %v1389, %v1390
  %v1453 = vunpack.c.l.s4 1983009808
  %v1454 = vunpack.c.0.s8 %v1453
  %v1455 = vlaneseq
  %v1456 = vshrl.u32 %v1455, 7
  %v1457 = vsub.s32 %v1454, %v1456
  %v1458 = vrot.slane %v1451, %v1457
  %v1459 = vcombine.low %v1381, %v1388
  %v1461 = vunpack.c.l.s4 1983009808
  %v1462 = vunpack.c.0.s8 %v1461
  %v1463 = vlaneseq
  %v1464 = vshrl.u32 %v1463, 7
  %v1465 = vsub.s32 %v1462, %v1464
  %v1466 = vrot.slane %v1459, %v1465
  %v1467 = vcombine.low %v1391, %v1392
  %v1469 = vunpack.c.l.s4 1983009808
  %v1470 = vunpack.c.0.s8 %v1469
  %v1471 = vlaneseq
  %v1472 = vshrl.u32 %v1471, 7
  %v1473 = vsub.s32 %v1470, %v1472
  %v1474 = vrot.slane %v1467, %v1473
  %v1475 = vcombine.low %v1450, %v1458
  %v1477 = vunpack.c.l.s4 1934713408
  %v1478 = vunpack.c.0.s8 %v1477
  %v1479 = vlaneseq
  %v1480 = vshrl.u32 %v1479, 7
  %v1481 = vsub.s32 %v1478, %v1480
  %v1482 = vrot.slane %v1475, %v1481
  %v1483 = vcombine.low %v1466, %v1474
  %v1485 = vunpack.c.l.s4 1934713408
  %v1486 = vunpack.c.0.s8 %v1485
  %v1487 = vlaneseq
  %v1488 = vshrl.u32 %v1487, 7
  %v1489 = vsub.s32 %v1486, %v1488
  %v1490 = vrot.slane %v1483, %v1489
  %v1491 = vcombine.low %v1482, %v1490
  %v1492 = vcombine.high %v1482, %v1490
  %v1494 = vsel %vm274, %v1248, 0
  %v1497 = vsel %vm274, %v1250, 0
  %1499 = vmatprep.subr.mxu0 0.0
  %1500 = vmatpush1.msra.mxu0 0.0
  %1501 = vmatprep.subr.mxu0 0.0
  %1502 = vmatpush1.msra.mxu0 0.0
  %1503 = vmatprep.subr.mxu0 0.0
  %1504 = vmatpush1.msra.mxu0 0.0
  %1505 = vmatprep.subr.mxu0 0.0
  %1506 = vmatpush1.msra.mxu0 0.0
  %1507 = vmatprep.subr.mxu0 0.0
  %1508 = vmatpush1.msra.mxu0 0.0
  %1509 = vmatprep.subr.mxu0 0.0
  %1510 = vmatpush1.msra.mxu0 0.0
  %1511 = vmatprep.subr.mxu0 0.0
  %1512 = vmatpush1.msra.mxu0 0.0
  %1513 = vmatprep.subr.mxu0 0.0
  %1514 = vmatpush1.msra.mxu0 0.0
  %1515 = vmatprep.subr.mxu0 0.0
  %1516 = vmatpush1.msra.mxu0 0.0
  %1517 = vmatprep.subr.mxu0 0.0
  %1518 = vmatpush1.msra.mxu0 0.0
  %1519 = vmatprep.subr.mxu0 0.0
  %1520 = vmatpush1.msra.mxu0 0.0
  %1521 = vmatprep.subr.mxu0 0.0
  %1522 = vmatpush1.msra.mxu0 0.0
  %1523 = vmatprep.subr.mxu0 0.0
  %1524 = vmatpush1.msra.mxu0 0.0
  %1525 = vmatprep.subr.mxu0 0.0
  %1526 = vmatpush1.msra.mxu0 0.0
  %1527 = vmatprep.subr.mxu0 0.0
  %1528 = vmatpush1.msra.mxu0 %v1491
  %1529 = vmatprep.subr.mxu0 0.0
  %1530 = vmatpush1.msra.mxu0 %v1441
  %1531 = vmatprep.subr.mxu0 0.0
  %1532 = vmatpush2.msra.mxu0 0.0
  %1533 = vmatprep.subr.mxu0 0.0
  %1534 = vmatpush2.msra.mxu0 0.0
  %1535 = vmatprep.subr.mxu0 0.0
  %1536 = vmatpush2.msra.mxu0 0.0
  %1537 = vmatprep.subr.mxu0 0.0
  %1538 = vmatpush2.msra.mxu0 0.0
  %1539 = vmatprep.subr.mxu0 0.0
  %1540 = vmatpush2.msra.mxu0 0.0
  %1541 = vmatprep.subr.mxu0 0.0
  %1542 = vmatpush2.msra.mxu0 0.0
  %1543 = vmatprep.subr.mxu0 0.0
  %1544 = vmatpush2.msra.mxu0 0.0
  %1545 = vmatprep.subr.mxu0 0.0
  %1546 = vmatpush2.msra.mxu0 0.0
  %1547 = vmatprep.subr.mxu0 0.0
  %1548 = vmatpush2.msra.mxu0 0.0
  %1549 = vmatprep.subr.mxu0 0.0
  %1550 = vmatpush2.msra.mxu0 0.0
  %1551 = vmatprep.subr.mxu0 0.0
  %1552 = vmatpush2.msra.mxu0 0.0
  %1553 = vmatprep.subr.mxu0 0.0
  %1554 = vmatpush2.msra.mxu0 0.0
  %1555 = vmatprep.subr.mxu0 0.0
  %1556 = vmatpush2.msra.mxu0 0.0
  %1557 = vmatprep.subr.mxu0 0.0
  %1558 = vmatpush2.msra.mxu0 0.0
  %1559 = vmatprep.subr.mxu0 0.0
  %1560 = vmatpush2.msra.mxu0 0.0
  %1561 = vmatprep.subr.mxu0 0.0
  %1562 = vmatpush2.msra.mxu0 0.0
  %1563 = vmatprep.mubr.f32.mxu0 0.0
  %1564 = vmatmul.mubr.f32.gmra.mxu0 %v1494
  %v1565 = vpop.f32.mrf.mxu0
  %v1566 = vadd.f32 0.0, %v1565
  %v1567 = vpop.f32.mrf.mxu0
  %1568 = vmatprep.mubr.f32.mxu0 0.0
  %1569 = vmatmul.mubr.f32.gmra.mxu0 %v1497
  %v1570 = vpop.f32.mrf.mxu0
  %v1571 = vadd.f32 0.0, %v1570
  %v1572 = vpop.f32.mrf.mxu0
  %1573 = vdwg.mxu0
  %v1575 = vsel %vm274, %v1252, 0
  %v1578 = vsel %vm274, %v1254, 0
  %1580 = vmatprep.subr.mxu0 0.0
  %1581 = vmatpush1.msra.mxu0 0.0
  %1582 = vmatprep.subr.mxu0 0.0
  %1583 = vmatpush1.msra.mxu0 0.0
  %1584 = vmatprep.subr.mxu0 0.0
  %1585 = vmatpush1.msra.mxu0 0.0
  %1586 = vmatprep.subr.mxu0 0.0
  %1587 = vmatpush1.msra.mxu0 0.0
  %1588 = vmatprep.subr.mxu0 0.0
  %1589 = vmatpush1.msra.mxu0 0.0
  %1590 = vmatprep.subr.mxu0 0.0
  %1591 = vmatpush1.msra.mxu0 0.0
  %1592 = vmatprep.subr.mxu0 0.0
  %1593 = vmatpush1.msra.mxu0 0.0
  %1594 = vmatprep.subr.mxu0 0.0
  %1595 = vmatpush1.msra.mxu0 0.0
  %1596 = vmatprep.subr.mxu0 0.0
  %1597 = vmatpush1.msra.mxu0 0.0
  %1598 = vmatprep.subr.mxu0 0.0
  %1599 = vmatpush1.msra.mxu0 0.0
  %1600 = vmatprep.subr.mxu0 0.0
  %1601 = vmatpush1.msra.mxu0 0.0
  %1602 = vmatprep.subr.mxu0 0.0
  %1603 = vmatpush1.msra.mxu0 0.0
  %1604 = vmatprep.subr.mxu0 0.0
  %1605 = vmatpush1.msra.mxu0 0.0
  %1606 = vmatprep.subr.mxu0 0.0
  %1607 = vmatpush1.msra.mxu0 0.0
  %1608 = vmatprep.subr.mxu0 0.0
  %1609 = vmatpush1.msra.mxu0 %v1492
  %1610 = vmatprep.subr.mxu0 0.0
  %1611 = vmatpush1.msra.mxu0 %v1442
  %1612 = vmatprep.subr.mxu0 0.0
  %1613 = vmatpush2.msra.mxu0 0.0
  %1614 = vmatprep.subr.mxu0 0.0
  %1615 = vmatpush2.msra.mxu0 0.0
  %1616 = vmatprep.subr.mxu0 0.0
  %1617 = vmatpush2.msra.mxu0 0.0
  %1618 = vmatprep.subr.mxu0 0.0
  %1619 = vmatpush2.msra.mxu0 0.0
  %1620 = vmatprep.subr.mxu0 0.0
  %1621 = vmatpush2.msra.mxu0 0.0
  %1622 = vmatprep.subr.mxu0 0.0
  %1623 = vmatpush2.msra.mxu0 0.0
  %1624 = vmatprep.subr.mxu0 0.0
  %1625 = vmatpush2.msra.mxu0 0.0
  %1626 = vmatprep.subr.mxu0 0.0
  %1627 = vmatpush2.msra.mxu0 0.0
  %1628 = vmatprep.subr.mxu0 0.0
  %1629 = vmatpush2.msra.mxu0 0.0
  %1630 = vmatprep.subr.mxu0 0.0
  %1631 = vmatpush2.msra.mxu0 0.0
  %1632 = vmatprep.subr.mxu0 0.0
  %1633 = vmatpush2.msra.mxu0 0.0
  %1634 = vmatprep.subr.mxu0 0.0
  %1635 = vmatpush2.msra.mxu0 0.0
  %1636 = vmatprep.subr.mxu0 0.0
  %1637 = vmatpush2.msra.mxu0 0.0
  %1638 = vmatprep.subr.mxu0 0.0
  %1639 = vmatpush2.msra.mxu0 0.0
  %1640 = vmatprep.subr.mxu0 0.0
  %1641 = vmatpush2.msra.mxu0 0.0
  %1642 = vmatprep.subr.mxu0 0.0
  %1643 = vmatpush2.msra.mxu0 0.0
  %1644 = vmatprep.mubr.f32.mxu0 0.0
  %1645 = vmatmul.mubr.f32.gmra.mxu0 %v1575
  %v1646 = vpop.f32.mrf.mxu0
  %v1647 = vadd.f32 0.0, %v1646
  %v1648 = vpop.f32.mrf.mxu0
  %1649 = vmatprep.mubr.f32.mxu0 0.0
  %1650 = vmatmul.mubr.f32.gmra.mxu0 %v1578
  %v1651 = vpop.f32.mrf.mxu0
  %v1652 = vadd.f32 0.0, %v1651
  %v1653 = vpop.f32.mrf.mxu0
  %1654 = vdwg.mxu0
  %v1655 = vcombine.high %v1566, 0.0
  %v1657 = vunpack.c.l.s4 1983009808
  %v1658 = vunpack.c.0.s8 %v1657
  %v1659 = vlaneseq
  %v1660 = vshrl.u32 %v1659, 7
  %v1661 = vsub.s32 %v1658, %v1660
  %v1662 = vrot.slane %v1566, %v1661
  %v1664 = vunpack.c.l.s4 1983009808
  %v1665 = vunpack.c.0.s8 %v1664
  %v1666 = vlaneseq
  %v1667 = vshrl.u32 %v1666, 7
  %v1668 = vsub.s32 %v1665, %v1667
  %v1669 = vrot.slane %v1655, %v1668
  %v1670 = vcombine.high %v1647, 0.0
  %v1672 = vunpack.c.l.s4 1983009808
  %v1673 = vunpack.c.0.s8 %v1672
  %v1674 = vlaneseq
  %v1675 = vshrl.u32 %v1674, 7
  %v1676 = vsub.s32 %v1673, %v1675
  %v1677 = vrot.slane %v1647, %v1676
  %v1679 = vunpack.c.l.s4 1983009808
  %v1680 = vunpack.c.0.s8 %v1679
  %v1681 = vlaneseq
  %v1682 = vshrl.u32 %v1681, 7
  %v1683 = vsub.s32 %v1680, %v1682
  %v1684 = vrot.slane %v1670, %v1683
  %v1685 = vcombine.low %v1662, %v1677
  %v1686 = vcombine.high %v1662, %v1677
  %v1688 = vunpack.c.l.s4 1934713408
  %v1689 = vunpack.c.0.s8 %v1688
  %v1690 = vlaneseq
  %v1691 = vshrl.u32 %v1690, 7
  %v1692 = vsub.s32 %v1689, %v1691
  %v1693 = vrot.slane %v1685, %v1692
  %v1695 = vunpack.c.l.s4 1934713408
  %v1696 = vunpack.c.0.s8 %v1695
  %v1697 = vlaneseq
  %v1698 = vshrl.u32 %v1697, 7
  %v1699 = vsub.s32 %v1696, %v1698
  %v1700 = vrot.slane %v1686, %v1699
  %v1701 = vcombine.low %v1669, %v1684
  %v1702 = vcombine.high %v1669, %v1684
  %v1704 = vunpack.c.l.s4 1934713408
  %v1705 = vunpack.c.0.s8 %v1704
  %v1706 = vlaneseq
  %v1707 = vshrl.u32 %v1706, 7
  %v1708 = vsub.s32 %v1705, %v1707
  %v1709 = vrot.slane %v1701, %v1708
  %v1711 = vunpack.c.l.s4 1934713408
  %v1712 = vunpack.c.0.s8 %v1711
  %v1713 = vlaneseq
  %v1714 = vshrl.u32 %v1713, 7
  %v1715 = vsub.s32 %v1712, %v1714
  %v1716 = vrot.slane %v1702, %v1715
  %v1717 = vcombine.high %v1693, 0.0
  %v1718 = vcombine.high %v1700, 0.0
  %v1719 = vcombine.high %v1709, 0.0
  %v1720 = vcombine.high %v1716, 0.0
  %v1721 = vcombine.high %v1571, 0.0
  %v1723 = vunpack.c.l.s4 1983009808
  %v1724 = vunpack.c.0.s8 %v1723
  %v1725 = vlaneseq
  %v1726 = vshrl.u32 %v1725, 7
  %v1727 = vsub.s32 %v1724, %v1726
  %v1728 = vrot.slane %v1571, %v1727
  %v1730 = vunpack.c.l.s4 1983009808
  %v1731 = vunpack.c.0.s8 %v1730
  %v1732 = vlaneseq
  %v1733 = vshrl.u32 %v1732, 7
  %v1734 = vsub.s32 %v1731, %v1733
  %v1735 = vrot.slane %v1721, %v1734
  %v1736 = vcombine.high %v1652, 0.0
  %v1738 = vunpack.c.l.s4 1983009808
  %v1739 = vunpack.c.0.s8 %v1738
  %v1740 = vlaneseq
  %v1741 = vshrl.u32 %v1740, 7
  %v1742 = vsub.s32 %v1739, %v1741
  %v1743 = vrot.slane %v1652, %v1742
  %v1745 = vunpack.c.l.s4 1983009808
  %v1746 = vunpack.c.0.s8 %v1745
  %v1747 = vlaneseq
  %v1748 = vshrl.u32 %v1747, 7
  %v1749 = vsub.s32 %v1746, %v1748
  %v1750 = vrot.slane %v1736, %v1749
  %v1751 = vcombine.low %v1728, %v1743
  %v1752 = vcombine.high %v1728, %v1743
  %v1754 = vunpack.c.l.s4 1934713408
  %v1755 = vunpack.c.0.s8 %v1754
  %v1756 = vlaneseq
  %v1757 = vshrl.u32 %v1756, 7
  %v1758 = vsub.s32 %v1755, %v1757
  %v1759 = vrot.slane %v1751, %v1758
  %v1761 = vunpack.c.l.s4 1934713408
  %v1762 = vunpack.c.0.s8 %v1761
  %v1763 = vlaneseq
  %v1764 = vshrl.u32 %v1763, 7
  %v1765 = vsub.s32 %v1762, %v1764
  %v1766 = vrot.slane %v1752, %v1765
  %v1767 = vcombine.low %v1735, %v1750
  %v1768 = vcombine.high %v1735, %v1750
  %v1770 = vunpack.c.l.s4 1934713408
  %v1771 = vunpack.c.0.s8 %v1770
  %v1772 = vlaneseq
  %v1773 = vshrl.u32 %v1772, 7
  %v1774 = vsub.s32 %v1771, %v1773
  %v1775 = vrot.slane %v1767, %v1774
  %v1777 = vunpack.c.l.s4 1934713408
  %v1778 = vunpack.c.0.s8 %v1777
  %v1779 = vlaneseq
  %v1780 = vshrl.u32 %v1779, 7
  %v1781 = vsub.s32 %v1778, %v1780
  %v1782 = vrot.slane %v1768, %v1781
  %v1783 = vcombine.high %v1759, 0.0
  %v1784 = vcombine.high %v1766, 0.0
  %v1785 = vcombine.high %v1775, 0.0
  %v1786 = vcombine.high %v1782, 0.0
  %v1787 = vcombine.low %v1693, %v1700
  %v1789 = vunpack.c.l.s4 1983009808
  %v1790 = vunpack.c.0.s8 %v1789
  %v1791 = vlaneseq
  %v1792 = vshrl.u32 %v1791, 7
  %v1793 = vsub.s32 %v1790, %v1792
  %v1794 = vrot.slane %v1787, %v1793
  %v1795 = vcombine.low %v1717, %v1718
  %v1797 = vunpack.c.l.s4 1983009808
  %v1798 = vunpack.c.0.s8 %v1797
  %v1799 = vlaneseq
  %v1800 = vshrl.u32 %v1799, 7
  %v1801 = vsub.s32 %v1798, %v1800
  %v1802 = vrot.slane %v1795, %v1801
  %v1803 = vcombine.low %v1709, %v1716
  %v1805 = vunpack.c.l.s4 1983009808
  %v1806 = vunpack.c.0.s8 %v1805
  %v1807 = vlaneseq
  %v1808 = vshrl.u32 %v1807, 7
  %v1809 = vsub.s32 %v1806, %v1808
  %v1810 = vrot.slane %v1803, %v1809
  %v1811 = vcombine.low %v1719, %v1720
  %v1813 = vunpack.c.l.s4 1983009808
  %v1814 = vunpack.c.0.s8 %v1813
  %v1815 = vlaneseq
  %v1816 = vshrl.u32 %v1815, 7
  %v1817 = vsub.s32 %v1814, %v1816
  %v1818 = vrot.slane %v1811, %v1817
  %v1819 = vcombine.low %v1794, %v1802
  %v1821 = vunpack.c.l.s4 1934713408
  %v1822 = vunpack.c.0.s8 %v1821
  %v1823 = vlaneseq
  %v1824 = vshrl.u32 %v1823, 7
  %v1825 = vsub.s32 %v1822, %v1824
  %v1826 = vrot.slane %v1819, %v1825
  %v1827 = vcombine.low %v1810, %v1818
  %v1829 = vunpack.c.l.s4 1934713408
  %v1830 = vunpack.c.0.s8 %v1829
  %v1831 = vlaneseq
  %v1832 = vshrl.u32 %v1831, 7
  %v1833 = vsub.s32 %v1830, %v1832
  %v1834 = vrot.slane %v1827, %v1833
  %v1835 = vcombine.low %v1826, %v1834
  %v1836 = vcombine.high %v1826, %v1834
  %v1837 = vcombine.low %v1759, %v1766
  %v1839 = vunpack.c.l.s4 1983009808
  %v1840 = vunpack.c.0.s8 %v1839
  %v1841 = vlaneseq
  %v1842 = vshrl.u32 %v1841, 7
  %v1843 = vsub.s32 %v1840, %v1842
  %v1844 = vrot.slane %v1837, %v1843
  %v1845 = vcombine.low %v1783, %v1784
  %v1847 = vunpack.c.l.s4 1983009808
  %v1848 = vunpack.c.0.s8 %v1847
  %v1849 = vlaneseq
  %v1850 = vshrl.u32 %v1849, 7
  %v1851 = vsub.s32 %v1848, %v1850
  %v1852 = vrot.slane %v1845, %v1851
  %v1853 = vcombine.low %v1775, %v1782
  %v1855 = vunpack.c.l.s4 1983009808
  %v1856 = vunpack.c.0.s8 %v1855
  %v1857 = vlaneseq
  %v1858 = vshrl.u32 %v1857, 7
  %v1859 = vsub.s32 %v1856, %v1858
  %v1860 = vrot.slane %v1853, %v1859
  %v1861 = vcombine.low %v1785, %v1786
  %v1863 = vunpack.c.l.s4 1983009808
  %v1864 = vunpack.c.0.s8 %v1863
  %v1865 = vlaneseq
  %v1866 = vshrl.u32 %v1865, 7
  %v1867 = vsub.s32 %v1864, %v1866
  %v1868 = vrot.slane %v1861, %v1867
  %v1869 = vcombine.low %v1844, %v1852
  %v1871 = vunpack.c.l.s4 1934713408
  %v1872 = vunpack.c.0.s8 %v1871
  %v1873 = vlaneseq
  %v1874 = vshrl.u32 %v1873, 7
  %v1875 = vsub.s32 %v1872, %v1874
  %v1876 = vrot.slane %v1869, %v1875
  %v1877 = vcombine.low %v1860, %v1868
  %v1879 = vunpack.c.l.s4 1934713408
  %v1880 = vunpack.c.0.s8 %v1879
  %v1881 = vlaneseq
  %v1882 = vshrl.u32 %v1881, 7
  %v1883 = vsub.s32 %v1880, %v1882
  %v1884 = vrot.slane %v1877, %v1883
  %v1885 = vcombine.low %v1876, %v1884
  %v1886 = vcombine.high %v1876, %v1884
  %1889 = vrot.lane.b32.xlu0 %v1836, 4
  %v1890 = vpop.permute.xlu0 %1889
  %1891 = vrot.lane.b32.xlu0 %v1886, 4
  %v1892 = vpop.permute.xlu0 %1891
  %v1895 = vsel %vm29, %v1835, %v1890
  %v1896 = vsel %vm29, %v1885, %v1892
  %v1898 = vlaneseq
  %v1899 = vshrl.u32 %v1898, 7
  %v1900 = vsub.s32 0, %v1899
  %v1901 = vrot.slane %v975, %v1900
  %v1903 = vadd.f32 %v1895, %v1901
  %v1904 = vadd.f32 %v1896, %v1901
  %vm1905 = vcmask 64512
  %1906 = vst.msk [vmem:[%s6] sm:$0xff] %vm1905, %v1903
  %1907 = vst.msk [vmem:[%s6 + $0x8] sm:$0xff] %vm1905, %v1904
  // Predicated region
  $region26: #{tpu_custom_call.1} parent=0 // pred_check
    _
  $region27: #{tpu_custom_call.1} parent=0 // pred_check_branch
    %1909 = sbr.rel (0) target = $region29
  $region28: #{tpu_custom_call.1} parent=0 // pred_region
    _
  $region29: #{tpu_custom_call.1} parent=0 // pred_fallthru
    _
  // Predicated region
  $region30: #{tpu_custom_call.1} parent=0 // pred_check
    _
  $region31: #{tpu_custom_call.1} parent=0 // pred_check_branch
    %1911 = sbr.rel (0) target = $region33
  $region32: #{tpu_custom_call.1} parent=0 // pred_region
    _
  $region33: #{tpu_custom_call.1} parent=0 // pred_fallthru
    _

</llo_original>
